<compile_context>
chip_gen: v7x
topology: tpu7x:2x2x1
jax: 0.10.0
libtpu: 0.0.40
codegen_flags: <defaults>
</compile_context>

<pallas_src>
import functools
import math

import jax
import jax.numpy as jnp
from jax import lax
from jax.experimental import pallas as pl
from jax.experimental.pallas import tpu as pltpu

BN_EPS = 1e-5
_SQRT_2_OVER_PI = math.sqrt(2.0 / math.pi)


def _gelu_tanh(x):
    # TODO(synk): exact-erf GELU (torch.nn.GELU default) has no direct Mosaic lowering used
    # here; tanh-form GELU (max abs deviation ~3e-4) runs on the EUP slot instead.
    return 0.5 * x * (1.0 + jnp.tanh(_SQRT_2_OVER_PI * (x + 0.044715 * x * x * x)))


def _batchnorm(x, gamma, beta):
    # nn.BatchNorm1d training-mode normalization over the flattened (bs*q_len) token axis:
    # two-pass mean / E[(x-mean)^2] (biased variance), eps=1e-5, affine gamma/beta.
    mean = jnp.mean(x, axis=0, keepdims=True)
    cent = x - mean
    var = jnp.mean(cent * cent, axis=0, keepdims=True)
    return cent * lax.rsqrt(var + BN_EPS) * gamma + beta


def tst_encoder_layer_kernel(
    x_ref,
    wqkv_ref, bqkv_ref, wo_ref, bo_ref,
    g1_ref, be1_ref,
    w1_ref, b1_ref, w2_ref, b2_ref,
    g2_ref, be2_ref,
    out_ref, attn_ref=None,
    *, bs, q_len, n_heads, mxu_dtype,
):
    N, d_model = x_ref.shape                 # N = bs * q_len (tokens flattened)
    d_k = d_model // n_heads
    BH = bs * n_heads

    x = x_ref[...]                           # (N, d_model) fp32
    xm = x.astype(mxu_dtype)                 # bf16 operands, fp32 accumulation (MXU-native)

    # -------- fused QKV projection: ONE (N,d_model)x(d_model,3*d_model) MXU matmul --------
    # (1/sqrt(d_k) is already folded into the Q columns of wqkv/bqkv by the wrapper.)
    qkv = jnp.dot(xm, wqkv_ref[...], preferred_element_type=jnp.float32) + bqkv_ref[...]
    qkv = qkv.reshape(bs, q_len, 3 * d_model).astype(mxu_dtype)   # bf16 -> halve relayouts

    # -------- fold heads into the batch axis: (bs*n_heads, q_len, d_k), b-major/h-minor ----
    def heads(base):
        hs = [qkv[:, :, base + h * d_k: base + (h + 1) * d_k] for h in range(n_heads)]
        return jnp.stack(hs, axis=1).reshape(BH, q_len, d_k)

    q = heads(0)
    k = heads(d_model)
    v = heads(2 * d_model)

    # -------- attention: two batched einsums over bs*n_heads (no per-head matmuls) ---------
    s = jnp.einsum("bqd,bkd->bqk", q, k, preferred_element_type=jnp.float32)
    m = jnp.max(s, axis=-1, keepdims=True)
    e = jnp.exp(s - m)
    a = e / jnp.sum(e, axis=-1, keepdims=True)   # exact divide: stored attn rows sum to 1

    if attn_ref is not None:
        # one slab store, directly in the module's (bs, n_heads, q_len, q_len) layout
        attn_ref[...] = a.reshape(bs, n_heads, q_len, q_len)

    o = jnp.einsum("bqk,bkd->bqd", a.astype(mxu_dtype), v,
                   preferred_element_type=jnp.float32)

    # Merge heads back to (N, d_model) with head-major feature order (bf16 relayout).
    o4 = o.astype(mxu_dtype).reshape(bs, n_heads, q_len, d_k)
    o = jnp.concatenate([o4[:, h] for h in range(n_heads)], axis=-1).reshape(N, d_model)

    # Output projection as one fused matmul.
    o = jnp.dot(o, wo_ref[...], preferred_element_type=jnp.float32) + bo_ref[...]

    # Residual (dropout p=0 -> identity) + BatchNorm over d_model.
    src = _batchnorm(x + o, g1_ref[...], be1_ref[...])

    # -------- position-wise feed-forward, fused over all N tokens --------
    h1 = jnp.dot(src.astype(mxu_dtype), w1_ref[...],
                 preferred_element_type=jnp.float32) + b1_ref[...]
    h1 = _gelu_tanh(h1)
    h2 = jnp.dot(h1.astype(mxu_dtype), w2_ref[...],
                 preferred_element_type=jnp.float32) + b2_ref[...]

    out_ref[...] = _batchnorm(src + h2, g2_ref[...], be2_ref[...])


def tst_encoder_layer(x, params, n_heads, *, mxu_dtype=jnp.bfloat16, return_attn=True,
                      vmem_limit_bytes=48 * 1024 * 1024):
    """TSTEncoderLayer forward (res_attention=False, pre_norm=False, norm='BatchNorm',
    dropout=0 -- matching the module defaults used here).
    Returns (out [bs,q_len,d_model] fp32, attn [bs,n_heads,q_len,q_len] fp32), or just out
    when return_attn=False (avoids the O(q_len^2) HBM writeback entirely)."""
    bs, q_len, d_model = x.shape
    assert d_model % n_heads == 0, "d_model must be divisible by n_heads"
    d_k = d_model // n_heads
    N = bs * q_len
    scale = 1.0 / math.sqrt(d_k)

    # Flatten tokens outside the kernel (free layout plumbing).
    x2 = x.reshape(N, d_model).astype(jnp.float32)

    # Fused QKV weight/bias with the 1/sqrt(d_k) score scale folded into the Q columns
    # (zero runtime cost).  MXU operands pre-cast to bf16 (halves weight HBM/VMEM traffic);
    # biases and BN affine parameters stay fp32.
    wqkv = jnp.concatenate([params["wq"] * scale, params["wk"], params["wv"]],
                           axis=1).astype(mxu_dtype)
    bqkv = jnp.concatenate([params["bq"] * scale, params["bk"], params["bv"]],
                           axis=1).astype(jnp.float32)

    def wcast(w):
        return w.astype(mxu_dtype)

    args = [
        x2, wqkv, bqkv,
        wcast(params["wo"]), params["bo"],
        params["g1"], params["be1"],
        wcast(params["w1"]), params["b1"], wcast(params["w2"]), params["b2"],
        params["g2"], params["be2"],
    ]

    out_shape = [jax.ShapeDtypeStruct((N, d_model), jnp.float32)]
    if return_attn:
        out_shape.append(jax.ShapeDtypeStruct((bs, n_heads, q_len, q_len), jnp.float32))

    kernel = functools.partial(
        tst_encoder_layer_kernel, bs=bs, q_len=q_len, n_heads=n_heads, mxu_dtype=mxu_dtype)

    # No grid: every operand is mapped whole into VMEM exactly once (single-buffered, no
    # pipeline fill/drain for a 1-step problem).
    vmem_spec = pl.BlockSpec(memory_space=pltpu.MemorySpace.VMEM)
    outs = pl.pallas_call(
        kernel,
        out_shape=tuple(out_shape),
        in_specs=[vmem_spec] * len(args),
        out_specs=tuple([vmem_spec] * len(out_shape)),
        compiler_params=pltpu.CompilerParams(
            # <= ~48 MiB keeps headroom on v7x (64 MiB/TC); raise toward 96 MiB on v5e/v6e
            # (128 MiB physical) before shrinking the resident working set.
            vmem_limit_bytes=vmem_limit_bytes,
        ),
    )(*args)

    out2 = outs[0].reshape(bs, q_len, d_model)
    if return_attn:
        return out2, outs[1]
    return out2


# ---------------- pure-JAX reference (for correctness check) ----------------
def ref_forward(x, p, n_heads, matmul_dtype=None):
    """Reference forward.  If matmul_dtype is set, matmul operands are cast to it
    (mirrors the kernel's bf16-in / fp32-accumulate MXU contract)."""
    bs, q_len, d_model = x.shape
    d_k = d_model // n_heads

    def mc(a):
        return a if matmul_dtype is None else a.astype(matmul_dtype)

    def mm(a, b):
        return jnp.dot(mc(a), mc(b), preferred_element_type=jnp.float32)

    with jax.default_matmul_precision("float32"):
        x2 = x.reshape(bs * q_len, d_model)
        q = mm(x2, p["wq"]) + p["bq"]
        k = mm(x2, p["wk"]) + p["bk"]
        v = mm(x2, p["wv"]) + p["bv"]
        qh = q.reshape(bs, q_len, n_heads, d_k).transpose(0, 2, 1, 3)
        kh = k.reshape(bs, q_len, n_heads, d_k).transpose(0, 2, 1, 3)
        vh = v.reshape(bs, q_len, n_heads, d_k).transpose(0, 2, 1, 3)
        scores = jnp.einsum("bhqd,bhkd->bhqk", mc(qh), mc(kh),
                            preferred_element_type=jnp.float32) / math.sqrt(d_k)
        attn = jax.nn.softmax(scores, axis=-1)
        o = jnp.einsum("bhqk,bhkd->bhqd", mc(attn), mc(vh),
                       preferred_element_type=jnp.float32)
        o = o.transpose(0, 2, 1, 3).reshape(bs * q_len, d_model)
        o = mm(o, p["wo"]) + p["bo"]
        src = x2 + o

        def bn(z, g, b):
            m = z.mean(axis=0, keepdims=True)
            var = ((z - m) ** 2).mean(axis=0, keepdims=True)
            return (z - m) / jnp.sqrt(var + BN_EPS) * g + b

        src = bn(src, p["g1"], p["be1"])
        h = jax.nn.gelu(mm(src, p["w1"]) + p["b1"], approximate=False)
        src2 = mm(h, p["w2"]) + p["b2"]
        src = bn(src + src2, p["g2"], p["be2"])
    return src.reshape(bs, q_len, d_model), attn


if __name__ == "__main__":
    bs, q_len, d_model, n_heads, d_ff = 2, 8, 32, 4, 64

    key = jax.random.PRNGKey(0)
    keys = jax.random.split(key, 18)

    def w(k, shape, scale=0.1):
        return (scale * jax.random.normal(k, shape)).astype(jnp.float32)

    params = dict(
        wq=w(keys[0], (d_model, d_model)), bq=w(keys[1], (1, d_model)),
        wk=w(keys[2], (d_model, d_model)), bk=w(keys[3], (1, d_model)),
        wv=w(keys[4], (d_model, d_model)), bv=w(keys[5], (1, d_model)),
        wo=w(keys[6], (d_model, d_model)), bo=w(keys[7], (1, d_model)),
        g1=(1.0 + w(keys[8], (1, d_model))).astype(jnp.float32), be1=w(keys[9], (1, d_model)),
        w1=w(keys[10], (d_model, d_ff)), b1=w(keys[11], (1, d_ff)),
        w2=w(keys[12], (d_ff, d_model)), b2=w(keys[13], (1, d_model)),
        g2=(1.0 + w(keys[14], (1, d_model))).astype(jnp.float32), be2=w(keys[15], (1, d_model)),
    )
    x = jax.random.normal(keys[16], (bs, q_len, d_model), dtype=jnp.float32)

    out, attn = tst_encoder_layer(x, params, n_heads)
    out = jax.block_until_ready(out)
    attn = jax.block_until_ready(attn)

    assert out.shape == (bs, q_len, d_model)
    assert attn.shape == (bs, n_heads, q_len, q_len)

    # Tight check vs. a reference using the same bf16-operand / fp32-accumulate matmuls.
    out_m, attn_m = ref_forward(x, params, n_heads, matmul_dtype=jnp.bfloat16)
    assert jnp.allclose(out, out_m, rtol=1e-2, atol=1e-2)
    assert jnp.allclose(attn, attn_m, rtol=1e-2, atol=1e-2)

    # Looser fidelity check vs. the full-fp32 reference (accounts for bf16 MXU operands
    # and the tanh-form GELU).
    out_f, attn_f = ref_forward(x, params, n_heads, matmul_dtype=None)
    assert jnp.allclose(out, out_f, rtol=5e-2, atol=5e-2)
    assert jnp.allclose(attn, attn_f, rtol=2e-2, atol=2e-2)

    print("KERNEL_OK")
</pallas_src>

<mosaic_0001>
module attributes {stable_mosaic.version = 11 : i64} {
  func.func @tst_encoder_layer_kernel(%arg0: memref<16x32xf32, #tpu.memory_space<vmem>>, %arg1: memref<32x96xbf16, #tpu.memory_space<vmem>>, %arg2: memref<1x96xf32, #tpu.memory_space<vmem>>, %arg3: memref<32x32xbf16, #tpu.memory_space<vmem>>, %arg4: memref<1x32xf32, #tpu.memory_space<vmem>>, %arg5: memref<1x32xf32, #tpu.memory_space<vmem>>, %arg6: memref<1x32xf32, #tpu.memory_space<vmem>>, %arg7: memref<32x64xbf16, #tpu.memory_space<vmem>>, %arg8: memref<1x64xf32, #tpu.memory_space<vmem>>, %arg9: memref<64x32xbf16, #tpu.memory_space<vmem>>, %arg10: memref<1x32xf32, #tpu.memory_space<vmem>>, %arg11: memref<1x32xf32, #tpu.memory_space<vmem>>, %arg12: memref<1x32xf32, #tpu.memory_space<vmem>>, %arg13: memref<16x32xf32, #tpu.memory_space<vmem>>, %arg14: memref<2x4x8x8xf32, #tpu.memory_space<vmem>>) attributes {dimension_semantics = [], scalar_prefetch = 0 : i64, scratch_operands = 0 : i64, tpu.core_type = #tpu.core_type<tc>} {
    %c0 = arith.constant 0 : index
    %c0_0 = arith.constant 0 : index
    %0 = vector.load %arg0[%c0, %c0_0] : memref<16x32xf32, #tpu.memory_space<vmem>>, vector<16x32xf32>
    %1 = arith.truncf %0 : vector<16x32xf32> to vector<16x32xbf16>
    %c0_1 = arith.constant 0 : index
    %c0_2 = arith.constant 0 : index
    %2 = vector.load %arg1[%c0_1, %c0_2] : memref<32x96xbf16, #tpu.memory_space<vmem>>, vector<32x96xbf16>
    %cst = arith.constant dense<0.000000e+00> : vector<16x96xf32>
    %3 = tpu.matmul %1, %2, %cst {dimension_numbers = #tpu.dot_dimension_numbers<[1], [0], [0], [1], [0, 0, 1, 1], [], []>} : vector<16x32xbf16>, vector<32x96xbf16>, vector<16x96xf32> -> vector<16x96xf32>
    %c0_3 = arith.constant 0 : index
    %c0_4 = arith.constant 0 : index
    %4 = vector.load %arg2[%c0_3, %c0_4] : memref<1x96xf32, #tpu.memory_space<vmem>>, vector<1x96xf32>
    %5 = vector.broadcast %4 : vector<1x96xf32> to vector<16x96xf32>
    %6 = arith.addf %3, %5 : vector<16x96xf32>
    %7 = vector.shape_cast %6 : vector<16x96xf32> to vector<2x8x96xf32>
    %8 = arith.truncf %7 : vector<2x8x96xf32> to vector<2x8x96xbf16>
    %9 = vector.extract_strided_slice %8 {offsets = [0, 0, 0], sizes = [2, 8, 8], strides = [1, 1, 1]} : vector<2x8x96xbf16> to vector<2x8x8xbf16>
    %10 = vector.extract_strided_slice %8 {offsets = [0, 0, 8], sizes = [2, 8, 8], strides = [1, 1, 1]} : vector<2x8x96xbf16> to vector<2x8x8xbf16>
    %11 = vector.extract_strided_slice %8 {offsets = [0, 0, 16], sizes = [2, 8, 8], strides = [1, 1, 1]} : vector<2x8x96xbf16> to vector<2x8x8xbf16>
    %12 = vector.extract_strided_slice %8 {offsets = [0, 0, 24], sizes = [2, 8, 8], strides = [1, 1, 1]} : vector<2x8x96xbf16> to vector<2x8x8xbf16>
    %13 = vector.shape_cast %9 : vector<2x8x8xbf16> to vector<2x1x8x8xbf16>
    %14 = vector.shape_cast %10 : vector<2x8x8xbf16> to vector<2x1x8x8xbf16>
    %15 = vector.shape_cast %11 : vector<2x8x8xbf16> to vector<2x1x8x8xbf16>
    %16 = vector.shape_cast %12 : vector<2x8x8xbf16> to vector<2x1x8x8xbf16>
    %17 = tpu.concatenate %13, %14, %15, %16 in 1 : vector<2x1x8x8xbf16>, vector<2x1x8x8xbf16>, vector<2x1x8x8xbf16>, vector<2x1x8x8xbf16> -> vector<2x4x8x8xbf16>
    %18 = vector.shape_cast %17 : vector<2x4x8x8xbf16> to vector<8x8x8xbf16>
    %19 = vector.extract_strided_slice %8 {offsets = [0, 0, 32], sizes = [2, 8, 8], strides = [1, 1, 1]} : vector<2x8x96xbf16> to vector<2x8x8xbf16>
    %20 = vector.extract_strided_slice %8 {offsets = [0, 0, 40], sizes = [2, 8, 8], strides = [1, 1, 1]} : vector<2x8x96xbf16> to vector<2x8x8xbf16>
    %21 = vector.extract_strided_slice %8 {offsets = [0, 0, 48], sizes = [2, 8, 8], strides = [1, 1, 1]} : vector<2x8x96xbf16> to vector<2x8x8xbf16>
    %22 = vector.extract_strided_slice %8 {offsets = [0, 0, 56], sizes = [2, 8, 8], strides = [1, 1, 1]} : vector<2x8x96xbf16> to vector<2x8x8xbf16>
    %23 = vector.shape_cast %19 : vector<2x8x8xbf16> to vector<2x1x8x8xbf16>
    %24 = vector.shape_cast %20 : vector<2x8x8xbf16> to vector<2x1x8x8xbf16>
    %25 = vector.shape_cast %21 : vector<2x8x8xbf16> to vector<2x1x8x8xbf16>
    %26 = vector.shape_cast %22 : vector<2x8x8xbf16> to vector<2x1x8x8xbf16>
    %27 = tpu.concatenate %23, %24, %25, %26 in 1 : vector<2x1x8x8xbf16>, vector<2x1x8x8xbf16>, vector<2x1x8x8xbf16>, vector<2x1x8x8xbf16> -> vector<2x4x8x8xbf16>
    %28 = vector.shape_cast %27 : vector<2x4x8x8xbf16> to vector<8x8x8xbf16>
    %29 = vector.extract_strided_slice %8 {offsets = [0, 0, 64], sizes = [2, 8, 8], strides = [1, 1, 1]} : vector<2x8x96xbf16> to vector<2x8x8xbf16>
    %30 = vector.extract_strided_slice %8 {offsets = [0, 0, 72], sizes = [2, 8, 8], strides = [1, 1, 1]} : vector<2x8x96xbf16> to vector<2x8x8xbf16>
    %31 = vector.extract_strided_slice %8 {offsets = [0, 0, 80], sizes = [2, 8, 8], strides = [1, 1, 1]} : vector<2x8x96xbf16> to vector<2x8x8xbf16>
    %32 = vector.extract_strided_slice %8 {offsets = [0, 0, 88], sizes = [2, 8, 8], strides = [1, 1, 1]} : vector<2x8x96xbf16> to vector<2x8x8xbf16>
    %33 = vector.shape_cast %29 : vector<2x8x8xbf16> to vector<2x1x8x8xbf16>
    %34 = vector.shape_cast %30 : vector<2x8x8xbf16> to vector<2x1x8x8xbf16>
    %35 = vector.shape_cast %31 : vector<2x8x8xbf16> to vector<2x1x8x8xbf16>
    %36 = vector.shape_cast %32 : vector<2x8x8xbf16> to vector<2x1x8x8xbf16>
    %37 = tpu.concatenate %33, %34, %35, %36 in 1 : vector<2x1x8x8xbf16>, vector<2x1x8x8xbf16>, vector<2x1x8x8xbf16>, vector<2x1x8x8xbf16> -> vector<2x4x8x8xbf16>
    %38 = vector.shape_cast %37 : vector<2x4x8x8xbf16> to vector<8x8x8xbf16>
    "tpu.trace_start"() <{level = 10 : i32, message = "bqd,bkd->bqk"}> : () -> ()
    %cst_5 = arith.constant dense<0.000000e+00> : vector<8x8x8xf32>
    %39 = tpu.matmul %18, %28, %cst_5 {dimension_numbers = #tpu.dot_dimension_numbers<[2], [2], [1], [1], [0, 0, 0, 1, 1, 1], [0], [0]>} : vector<8x8x8xbf16>, vector<8x8x8xbf16>, vector<8x8x8xf32> -> vector<8x8x8xf32>
    "tpu.trace_stop"() : () -> ()
    %cst_6 = arith.constant dense<0xFF800000> : vector<8x8xf32>
    %40 = vector.multi_reduction <maximumf>, %39, %cst_6 [2] : vector<8x8x8xf32> to vector<8x8xf32>
    %41 = vector.shape_cast %40 : vector<8x8xf32> to vector<8x8x1xf32>
    %42 = vector.broadcast %41 : vector<8x8x1xf32> to vector<8x8x8xf32>
    %43 = arith.subf %39, %42 : vector<8x8x8xf32>
    %44 = math.exp %43 : vector<8x8x8xf32>
    %cst_7 = arith.constant dense<0.000000e+00> : vector<8x8xf32>
    %45 = vector.multi_reduction <add>, %44, %cst_7 [2] : vector<8x8x8xf32> to vector<8x8xf32>
    %46 = vector.shape_cast %45 : vector<8x8xf32> to vector<8x8x1xf32>
    %47 = vector.broadcast %46 : vector<8x8x1xf32> to vector<8x8x8xf32>
    %48 = arith.divf %44, %47 : vector<8x8x8xf32>
    %49 = vector.shape_cast %48 : vector<8x8x8xf32> to vector<2x4x8x8xf32>
    %c0_8 = arith.constant 0 : index
    %c0_9 = arith.constant 0 : index
    %c0_10 = arith.constant 0 : index
    %c0_11 = arith.constant 0 : index
    %50 = vector.load %arg14[%c0_8, %c0_9, %c0_10, %c0_11] : memref<2x4x8x8xf32, #tpu.memory_space<vmem>>, vector<2x4x8x8xf32>
    tpu.vector_store %arg14[%c0_8, %c0_9, %c0_10, %c0_11], %49 {strides = array<i32>} : memref<2x4x8x8xf32, #tpu.memory_space<vmem>>, vector<2x4x8x8xf32>,
    %51 = arith.truncf %48 : vector<8x8x8xf32> to vector<8x8x8xbf16>
    "tpu.trace_start"() <{level = 10 : i32, message = "bqk,bkd->bqd"}> : () -> ()
    %cst_12 = arith.constant dense<0.000000e+00> : vector<8x8x8xf32>
    %52 = tpu.matmul %51, %38, %cst_12 {dimension_numbers = #tpu.dot_dimension_numbers<[2], [1], [1], [2], [0, 0, 0, 1, 1, 2], [0], [0]>} : vector<8x8x8xbf16>, vector<8x8x8xbf16>, vector<8x8x8xf32> -> vector<8x8x8xf32>
    "tpu.trace_stop"() : () -> ()
    %53 = arith.truncf %52 : vector<8x8x8xf32> to vector<8x8x8xbf16>
    %54 = vector.shape_cast %53 : vector<8x8x8xbf16> to vector<2x4x8x8xbf16>
    %55 = vector.extract_strided_slice %54 {offsets = [0, 0, 0, 0], sizes = [2, 1, 8, 8], strides = [1, 1, 1, 1]} : vector<2x4x8x8xbf16> to vector<2x1x8x8xbf16>
    %56 = vector.shape_cast %55 : vector<2x1x8x8xbf16> to vector<2x8x8xbf16>
    %57 = vector.extract_strided_slice %54 {offsets = [0, 1, 0, 0], sizes = [2, 1, 8, 8], strides = [1, 1, 1, 1]} : vector<2x4x8x8xbf16> to vector<2x1x8x8xbf16>
    %58 = vector.shape_cast %57 : vector<2x1x8x8xbf16> to vector<2x8x8xbf16>
    %59 = vector.extract_strided_slice %54 {offsets = [0, 2, 0, 0], sizes = [2, 1, 8, 8], strides = [1, 1, 1, 1]} : vector<2x4x8x8xbf16> to vector<2x1x8x8xbf16>
    %60 = vector.shape_cast %59 : vector<2x1x8x8xbf16> to vector<2x8x8xbf16>
    %61 = vector.extract_strided_slice %54 {offsets = [0, 3, 0, 0], sizes = [2, 1, 8, 8], strides = [1, 1, 1, 1]} : vector<2x4x8x8xbf16> to vector<2x1x8x8xbf16>
    %62 = vector.shape_cast %61 : vector<2x1x8x8xbf16> to vector<2x8x8xbf16>
    %63 = tpu.concatenate %56, %58, %60, %62 in 2 : vector<2x8x8xbf16>, vector<2x8x8xbf16>, vector<2x8x8xbf16>, vector<2x8x8xbf16> -> vector<2x8x32xbf16>
    %64 = vector.shape_cast %63 : vector<2x8x32xbf16> to vector<16x32xbf16>
    %c0_13 = arith.constant 0 : index
    %c0_14 = arith.constant 0 : index
    %65 = vector.load %arg3[%c0_13, %c0_14] : memref<32x32xbf16, #tpu.memory_space<vmem>>, vector<32x32xbf16>
    %cst_15 = arith.constant dense<0.000000e+00> : vector<16x32xf32>
    %66 = tpu.matmul %64, %65, %cst_15 {dimension_numbers = #tpu.dot_dimension_numbers<[1], [0], [0], [1], [0, 0, 1, 1], [], []>} : vector<16x32xbf16>, vector<32x32xbf16>, vector<16x32xf32> -> vector<16x32xf32>
    %c0_16 = arith.constant 0 : index
    %c0_17 = arith.constant 0 : index
    %67 = vector.load %arg4[%c0_16, %c0_17] : memref<1x32xf32, #tpu.memory_space<vmem>>, vector<1x32xf32>
    %68 = vector.broadcast %67 : vector<1x32xf32> to vector<16x32xf32>
    %69 = arith.addf %66, %68 : vector<16x32xf32>
    %70 = arith.addf %0, %69 : vector<16x32xf32>
    %c0_18 = arith.constant 0 : index
    %c0_19 = arith.constant 0 : index
    %71 = vector.load %arg5[%c0_18, %c0_19] : memref<1x32xf32, #tpu.memory_space<vmem>>, vector<1x32xf32>
    %c0_20 = arith.constant 0 : index
    %c0_21 = arith.constant 0 : index
    %72 = vector.load %arg6[%c0_20, %c0_21] : memref<1x32xf32, #tpu.memory_space<vmem>>, vector<1x32xf32>
    %cst_22 = arith.constant dense<0.000000e+00> : vector<32xf32>
    %73 = vector.multi_reduction <add>, %70, %cst_22 [0] : vector<16x32xf32> to vector<32xf32>
    %74 = vector.shape_cast %73 : vector<32xf32> to vector<1x32xf32>
    %cst_23 = arith.constant 1.600000e+01 : f32
    %75 = vector.broadcast %cst_23 : f32 to vector<1x32xf32>
    %76 = arith.divf %74, %75 : vector<1x32xf32>
    %77 = vector.broadcast %76 : vector<1x32xf32> to vector<16x32xf32>
    %78 = arith.subf %70, %77 : vector<16x32xf32>
    %79 = arith.mulf %78, %78 : vector<16x32xf32>
    %cst_24 = arith.constant dense<0.000000e+00> : vector<32xf32>
    %80 = vector.multi_reduction <add>, %79, %cst_24 [0] : vector<16x32xf32> to vector<32xf32>
    %81 = vector.shape_cast %80 : vector<32xf32> to vector<1x32xf32>
    %cst_25 = arith.constant 1.600000e+01 : f32
    %82 = vector.broadcast %cst_25 : f32 to vector<1x32xf32>
    %83 = arith.divf %81, %82 : vector<1x32xf32>
    %cst_26 = arith.constant 9.99999974E-6 : f32
    %84 = vector.broadcast %cst_26 : f32 to vector<1x32xf32>
    %85 = arith.addf %83, %84 : vector<1x32xf32>
    %86 = math.rsqrt %85 : vector<1x32xf32>
    %87 = vector.broadcast %86 : vector<1x32xf32> to vector<16x32xf32>
    %88 = arith.mulf %78, %87 : vector<16x32xf32>
    %89 = vector.broadcast %71 : vector<1x32xf32> to vector<16x32xf32>
    %90 = arith.mulf %88, %89 : vector<16x32xf32>
    %91 = vector.broadcast %72 : vector<1x32xf32> to vector<16x32xf32>
    %92 = arith.addf %90, %91 : vector<16x32xf32>
    %93 = arith.truncf %92 : vector<16x32xf32> to vector<16x32xbf16>
    %c0_27 = arith.constant 0 : index
    %c0_28 = arith.constant 0 : index
    %94 = vector.load %arg7[%c0_27, %c0_28] : memref<32x64xbf16, #tpu.memory_space<vmem>>, vector<32x64xbf16>
    %cst_29 = arith.constant dense<0.000000e+00> : vector<16x64xf32>
    %95 = tpu.matmul %93, %94, %cst_29 {dimension_numbers = #tpu.dot_dimension_numbers<[1], [0], [0], [1], [0, 0, 1, 1], [], []>} : vector<16x32xbf16>, vector<32x64xbf16>, vector<16x64xf32> -> vector<16x64xf32>
    %c0_30 = arith.constant 0 : index
    %c0_31 = arith.constant 0 : index
    %96 = vector.load %arg8[%c0_30, %c0_31] : memref<1x64xf32, #tpu.memory_space<vmem>>, vector<1x64xf32>
    %97 = vector.broadcast %96 : vector<1x64xf32> to vector<16x64xf32>
    %98 = arith.addf %95, %97 : vector<16x64xf32>
    %cst_32 = arith.constant 5.000000e-01 : f32
    %99 = vector.broadcast %cst_32 : f32 to vector<16x64xf32>
    %100 = arith.mulf %99, %98 : vector<16x64xf32>
    %cst_33 = arith.constant 4.471500e-02 : f32
    %101 = vector.broadcast %cst_33 : f32 to vector<16x64xf32>
    %102 = arith.mulf %101, %98 : vector<16x64xf32>
    %103 = arith.mulf %102, %98 : vector<16x64xf32>
    %104 = arith.mulf %103, %98 : vector<16x64xf32>
    %105 = arith.addf %98, %104 : vector<16x64xf32>
    %cst_34 = arith.constant 0.797884583 : f32
    %106 = vector.broadcast %cst_34 : f32 to vector<16x64xf32>
    %107 = arith.mulf %106, %105 : vector<16x64xf32>
    %108 = math.tanh %107 : vector<16x64xf32>
    %cst_35 = arith.constant 1.000000e+00 : f32
    %109 = vector.broadcast %cst_35 : f32 to vector<16x64xf32>
    %110 = arith.addf %109, %108 : vector<16x64xf32>
    %111 = arith.mulf %100, %110 : vector<16x64xf32>
    %112 = arith.truncf %111 : vector<16x64xf32> to vector<16x64xbf16>
    %c0_36 = arith.constant 0 : index
    %c0_37 = arith.constant 0 : index
    %113 = vector.load %arg9[%c0_36, %c0_37] : memref<64x32xbf16, #tpu.memory_space<vmem>>, vector<64x32xbf16>
    %cst_38 = arith.constant dense<0.000000e+00> : vector<16x32xf32>
    %114 = tpu.matmul %112, %113, %cst_38 {dimension_numbers = #tpu.dot_dimension_numbers<[1], [0], [0], [1], [0, 0, 1, 1], [], []>} : vector<16x64xbf16>, vector<64x32xbf16>, vector<16x32xf32> -> vector<16x32xf32>
    %c0_39 = arith.constant 0 : index
    %c0_40 = arith.constant 0 : index
    %115 = vector.load %arg10[%c0_39, %c0_40] : memref<1x32xf32, #tpu.memory_space<vmem>>, vector<1x32xf32>
    %116 = vector.broadcast %115 : vector<1x32xf32> to vector<16x32xf32>
    %117 = arith.addf %114, %116 : vector<16x32xf32>
    %118 = arith.addf %92, %117 : vector<16x32xf32>
    %c0_41 = arith.constant 0 : index
    %c0_42 = arith.constant 0 : index
    %119 = vector.load %arg11[%c0_41, %c0_42] : memref<1x32xf32, #tpu.memory_space<vmem>>, vector<1x32xf32>
    %c0_43 = arith.constant 0 : index
    %c0_44 = arith.constant 0 : index
    %120 = vector.load %arg12[%c0_43, %c0_44] : memref<1x32xf32, #tpu.memory_space<vmem>>, vector<1x32xf32>
    %cst_45 = arith.constant dense<0.000000e+00> : vector<32xf32>
    %121 = vector.multi_reduction <add>, %118, %cst_45 [0] : vector<16x32xf32> to vector<32xf32>
    %122 = vector.shape_cast %121 : vector<32xf32> to vector<1x32xf32>
    %cst_46 = arith.constant 1.600000e+01 : f32
    %123 = vector.broadcast %cst_46 : f32 to vector<1x32xf32>
    %124 = arith.divf %122, %123 : vector<1x32xf32>
    %125 = vector.broadcast %124 : vector<1x32xf32> to vector<16x32xf32>
    %126 = arith.subf %118, %125 : vector<16x32xf32>
    %127 = arith.mulf %126, %126 : vector<16x32xf32>
    %cst_47 = arith.constant dense<0.000000e+00> : vector<32xf32>
    %128 = vector.multi_reduction <add>, %127, %cst_47 [0] : vector<16x32xf32> to vector<32xf32>
    %129 = vector.shape_cast %128 : vector<32xf32> to vector<1x32xf32>
    %cst_48 = arith.constant 1.600000e+01 : f32
    %130 = vector.broadcast %cst_48 : f32 to vector<1x32xf32>
    %131 = arith.divf %129, %130 : vector<1x32xf32>
    %cst_49 = arith.constant 9.99999974E-6 : f32
    %132 = vector.broadcast %cst_49 : f32 to vector<1x32xf32>
    %133 = arith.addf %131, %132 : vector<1x32xf32>
    %134 = math.rsqrt %133 : vector<1x32xf32>
    %135 = vector.broadcast %134 : vector<1x32xf32> to vector<16x32xf32>
    %136 = arith.mulf %126, %135 : vector<16x32xf32>
    %137 = vector.broadcast %119 : vector<1x32xf32> to vector<16x32xf32>
    %138 = arith.mulf %136, %137 : vector<16x32xf32>
    %139 = vector.broadcast %120 : vector<1x32xf32> to vector<16x32xf32>
    %140 = arith.addf %138, %139 : vector<16x32xf32>
    %c0_50 = arith.constant 0 : index
    %c0_51 = arith.constant 0 : index
    %141 = vector.load %arg13[%c0_50, %c0_51] : memref<16x32xf32, #tpu.memory_space<vmem>>, vector<16x32xf32>
    tpu.vector_store %arg13[%c0_50, %c0_51], %140 {strides = array<i32>} : memref<16x32xf32, #tpu.memory_space<vmem>>, vector<16x32xf32>,
    return
  }
}

</mosaic_0001>

<llo_original>
// kernel: tpu_custom_call.1
$region0: #{tpu_custom_call.1}
  #allocation0 [shape = 'u32[]', space=smem, size = 0x4, offset = 0x4, fixed_abs, tag = 'smem constant byte address 0x4 - core index']
  #allocation1 [shape = 'u32[144,128]{1,0:T(1,128)}', space=vmem, size = 0x12000, scoped, tag = 'internal scratch']
  %s0 = inlined_call_operand.vmem [shape: f32[16,32], index: 0, kind: input, shape index: {}]
  %s1 = inlined_call_operand.vmem [shape: bf16[32,96], index: 1, kind: input, shape index: {}]
  %s2 = inlined_call_operand.vmem [shape: f32[1,96], index: 2, kind: input, shape index: {}]
  %s3 = inlined_call_operand.vmem [shape: bf16[32,32], index: 3, kind: input, shape index: {}]
  %s4 = inlined_call_operand.vmem [shape: f32[1,32], index: 4, kind: input, shape index: {}]
  %s5 = inlined_call_operand.vmem [shape: f32[1,32], index: 5, kind: input, shape index: {}]
  %s6 = inlined_call_operand.vmem [shape: f32[1,32], index: 6, kind: input, shape index: {}]
  %s7 = inlined_call_operand.hbm [shape: bf16[32,64], index: 7, kind: input, shape index: {}]
  %s8 = inlined_call_operand.vmem [shape: f32[1,64], index: 8, kind: input, shape index: {}]
  %s9 = inlined_call_operand.vmem [shape: bf16[64,32], index: 9, kind: input, shape index: {}]
  %s10 = inlined_call_operand.vmem [shape: f32[1,32], index: 10, kind: input, shape index: {}]
  %s11 = inlined_call_operand.vmem [shape: f32[1,32], index: 11, kind: input, shape index: {}]
  %s12 = inlined_call_operand.vmem [shape: f32[1,32], index: 12, kind: input, shape index: {}]
  %s13 = inlined_call_operand.hbm [shape: f32[16,32], index: 13, kind: output, shape index: {0}]
  %s14 = inlined_call_operand.hbm [shape: f32[2,4,8,8], index: 14, kind: output, shape index: {1}]
  %15 = xla_tuple %s13, %s14
  %s16 = sld [smem:[#allocation0]]
  $region74: #{tpu_custom_call.1} parent=0
    _
  %s18 = ssub.s32 1, %s16
  %s19 = scalar_select 0, %s18, %s16
  $region1: #{tpu_custom_call.1} parent=0
    #allocation2 [shape = 'u8[8192]{0}', space=vmem, size = 0x2000, scoped, tag = 'input window, operand 7, single buffered']
    #allocation3 [shape = 's32[1]{0}', space=sflag, size = 0x4, scoped, tag = 'scoped memory for tpu_custom_call.1']
    #allocation4 [shape = 's32[1]{0}', space=sflag, size = 0x4, scoped, tag = 'scoped memory for tpu_custom_call.1']
    #allocation5 [shape = 'u8[8192]{0}', space=vmem, size = 0x2000, scoped, tag = 'output window, operand 0, single buffered']
    #allocation6 [shape = 'u8[32768]{0}', space=vmem, size = 0x8000, scoped, tag = 'output window, operand 1, single buffered']
    #allocation7 [shape = 's32[1]{0}', space=sflag, size = 0x4, scoped, tag = 'scoped memory for tpu_custom_call.1']
    %20 = vsyncpa [#allocation3], 0
    %21 = vsyncpa [#allocation4], 0
    %22 = vsyncpa [#allocation7], 0
    // Predicated region
    $region2: #{tpu_custom_call.1} parent=1 // pred_check
      _
    $region3: #{tpu_custom_call.1} parent=1 // pred_check_branch
      %24 = sbr.rel (0) target = $region5
    $region4: #{tpu_custom_call.1} parent=1 // pred_region
      _
    $region5: #{tpu_custom_call.1} parent=1 // pred_fallthru
      _
    // Predicated region
    $region6: #{tpu_custom_call.1} parent=1 // pred_check
      _
    $region7: #{tpu_custom_call.1} parent=1 // pred_check_branch
      %26 = sbr.rel (0) target = $region9
    $region8: #{tpu_custom_call.1} parent=1 // pred_region
      _
    $region9: #{tpu_custom_call.1} parent=1 // pred_fallthru
      _
    // Predicated region
    $region10: #{tpu_custom_call.1} parent=1 // pred_check
      _
    $region11: #{tpu_custom_call.1} parent=1 // pred_check_branch
      %28 = sbr.rel (0) target = $region13
    $region12: #{tpu_custom_call.1} parent=1 // pred_region
      _
    $region13: #{tpu_custom_call.1} parent=1 // pred_fallthru
      _
    // Predicated region
    $region14: #{tpu_custom_call.1} parent=1 // pred_check
      _
    $region15: #{tpu_custom_call.1} parent=1 // pred_check_branch
      %30 = sbr.rel (0) target = $region17
    $region16: #{tpu_custom_call.1} parent=1 // pred_region
      _
    $region17: #{tpu_custom_call.1} parent=1 // pred_fallthru
      _
    // Predicated region
    $region18: #{tpu_custom_call.1} parent=1 // pred_check
      _
    $region19: #{tpu_custom_call.1} parent=1 // pred_check_branch
      %32 = sbr.rel (0) target = $region21
    $region20: #{tpu_custom_call.1} parent=1 // pred_region
      _
    $region21: #{tpu_custom_call.1} parent=1 // pred_fallthru
      _
    // Predicated region
    $region22: #{tpu_custom_call.1} parent=1 // pred_check
      _
    $region23: #{tpu_custom_call.1} parent=1 // pred_check_branch
      %34 = sbr.rel (0) target = $region25
    $region24: #{tpu_custom_call.1} parent=1 // pred_region
      _
    $region25: #{tpu_custom_call.1} parent=1 // pred_fallthru
      _
    // Predicated region
    $region26: #{tpu_custom_call.1} parent=1 // pred_check
      _
    $region27: #{tpu_custom_call.1} parent=1 // pred_check_branch
      %36 = sbr.rel (0) target = $region29
    $region28: #{tpu_custom_call.1} parent=1 // pred_region
      _
    $region29: #{tpu_custom_call.1} parent=1 // pred_fallthru
      _
    // Predicated region
    $region30: #{tpu_custom_call.1} parent=1 // pred_check
      _
    $region31: #{tpu_custom_call.1} parent=1 // pred_check_branch
      %38 = sbr.rel (0) target = $region33
    $region32: #{tpu_custom_call.1} parent=1 // pred_region
      %s40 = ssub.s32 256, 256
      %41 = vsyncadd [#allocation3], %s40
      %s42 = sshll.u32 [#allocation2], 4
      %s43 = int_to_ptr.vmem [resolvable:$true] %s42
      %48 = dma.hbm_to_vmem [thread:$0]  %s7, 256, %s43, [#allocation3], 64, 64, 4
    $region33: #{tpu_custom_call.1} parent=1 // pred_fallthru
      _
    // Predicated region
    $region34: #{tpu_custom_call.1} parent=1 // pred_check
      _
    $region35: #{tpu_custom_call.1} parent=1 // pred_check_branch
      %50 = sbr.rel (0) target = $region37
    $region36: #{tpu_custom_call.1} parent=1 // pred_region
      _
    $region37: #{tpu_custom_call.1} parent=1 // pred_fallthru
      _
    // Predicated region
    $region38: #{tpu_custom_call.1} parent=1 // pred_check
      _
    $region39: #{tpu_custom_call.1} parent=1 // pred_check_branch
      %52 = sbr.rel (0) target = $region41
    $region40: #{tpu_custom_call.1} parent=1 // pred_region
      _
    $region41: #{tpu_custom_call.1} parent=1 // pred_fallthru
      _
    // Predicated region
    $region42: #{tpu_custom_call.1} parent=1 // pred_check
      _
    $region43: #{tpu_custom_call.1} parent=1 // pred_check_branch
      %54 = sbr.rel (0) target = $region45
    $region44: #{tpu_custom_call.1} parent=1 // pred_region
      _
    $region45: #{tpu_custom_call.1} parent=1 // pred_fallthru
      _
    // Predicated region
    $region46: #{tpu_custom_call.1} parent=1 // pred_check
      _
    $region47: #{tpu_custom_call.1} parent=1 // pred_check_branch
      %56 = sbr.rel (0) target = $region49
    $region48: #{tpu_custom_call.1} parent=1 // pred_region
      _
    $region49: #{tpu_custom_call.1} parent=1 // pred_fallthru
      _
    // Predicated region
    $region50: #{tpu_custom_call.1} parent=1 // pred_check
      _
    $region51: #{tpu_custom_call.1} parent=1 // pred_check_branch
      %58 = sbr.rel (0) target = $region53
    $region52: #{tpu_custom_call.1} parent=1 // pred_region
      _
    $region53: #{tpu_custom_call.1} parent=1 // pred_fallthru
      _
    // Predicated region
    $region54: #{tpu_custom_call.1} parent=1 // pred_check
      _
    $region55: #{tpu_custom_call.1} parent=1 // pred_check_branch
      %60 = sbr.rel (0) target = $region57
    $region56: #{tpu_custom_call.1} parent=1 // pred_region
      %61 = dma.done [#allocation3], 256
    $region57: #{tpu_custom_call.1} parent=1 // pred_fallthru
      _
    %v63 = vld [vmem:[%s0] sm:$0xff]
    %v64 = vld [vmem:[%s0 + $0x8] sm:$0xff]
    %v65 = vpack.c.bf16 %v64, %v63
    %v66 = vld [vmem:[%s1] sm:$0xf]
    %v67 = vld [vmem:[%s1 + $0x4] sm:$0xf]
    %v68 = vld [vmem:[%s1 + $0x8] sm:$0xf]
    %v69 = vld [vmem:[%s1 + $0xc] sm:$0xf]
    %v70 = vld [vmem:[%s2] sm:$0x1]
    %v72 = vlaneseq
    %v73 = vshrl.u32 %v72, 7
    %v74 = vsub.s32 0, %v73
    %v75 = vrot.slane %v70, %v74
    %v81 = vunpack.c.l.b16 %v66
    %v82 = vunpack.c.l.b16 %v67
    %v83 = vunpack.c.l.b16 %v68
    %v84 = vunpack.c.l.b16 %v69
    %v85 = vpack.c.b16 %v82, %v81
    %v86 = vpack.c.b16 %v84, %v83
    %vm89 = vcmask 261120
    %v91 = vsel %vm89, %v65, 0
    %93 = vmatprep.subr.bf16.mxu0 0
    %94 = vmatpush1.bf16.msra.mxu0 %v85
    %95 = vmatprep.subr.bf16.mxu0 0
    %96 = vmatpush1.bf16.msra.mxu0 %v86
    %97 = vmatprep.subr.bf16.mxu0 0
    %98 = vmatpush1.bf16.msra.mxu0 0
    %99 = vmatprep.subr.bf16.mxu0 0
    %100 = vmatpush1.bf16.msra.mxu0 0
    %101 = vmatprep.subr.bf16.mxu0 0
    %102 = vmatpush1.bf16.msra.mxu0 0
    %103 = vmatprep.subr.bf16.mxu0 0
    %104 = vmatpush1.bf16.msra.mxu0 0
    %105 = vmatprep.subr.bf16.mxu0 0
    %106 = vmatpush1.bf16.msra.mxu0 0
    %107 = vmatprep.subr.bf16.mxu0 0
    %108 = vmatpush1.bf16.msra.mxu0 0
    %109 = vmatprep.subr.bf16.mxu0 0
    %110 = vmatpush1.bf16.msra.mxu0 0
    %111 = vmatprep.subr.bf16.mxu0 0
    %112 = vmatpush1.bf16.msra.mxu0 0
    %113 = vmatprep.subr.bf16.mxu0 0
    %114 = vmatpush1.bf16.msra.mxu0 0
    %115 = vmatprep.subr.bf16.mxu0 0
    %116 = vmatpush1.bf16.msra.mxu0 0
    %117 = vmatprep.subr.bf16.mxu0 0
    %118 = vmatpush1.bf16.msra.mxu0 0
    %119 = vmatprep.subr.bf16.mxu0 0
    %120 = vmatpush1.bf16.msra.mxu0 0
    %121 = vmatprep.subr.bf16.mxu0 0
    %122 = vmatpush1.bf16.msra.mxu0 0
    %123 = vmatprep.subr.bf16.mxu0 0
    %124 = vmatpush1.bf16.msra.mxu0 0
    %125 = vmatprep.mubr.bf16.mxu0 0
    %126 = vmatmul.mubr.bf16.gmra.mrb[0].mxu0 %v91
    %v127 = vpop.f32.mrb[0].mxu0
    %v128 = vadd.f32 %v75, %v127
    %v129 = vpop.f32.mrb[0].mxu0
    %v130 = vpop.f32.mrb[0].mxu0
    %v131 = vadd.f32 %v75, %v130
    %v132 = vpop.f32.mrb[0].mxu0
    %133 = vdwg.mxu0
    %v134 = vpack.c.bf16 %v128, %v128
    %v135 = vpack.c.bf16 %v131, %v131
    %138 = vrot.lane.b32.xlu0 %v134, 120
    %v139 = vpop.permute.xlu0 %138
    %140 = vrot.lane.b32.xlu0 %v135, 120
    %v141 = vpop.permute.xlu0 %140
    %142 = vrot.lane.b32.xlu0 %v134, 112
    %v143 = vpop.permute.xlu0 %142
    %144 = vrot.lane.b32.xlu0 %v135, 112
    %v145 = vpop.permute.xlu0 %144
    %146 = vrot.lane.b32.xlu0 %v134, 104
    %v147 = vpop.permute.xlu0 %146
    %148 = vrot.lane.b32.xlu0 %v135, 104
    %v149 = vpop.permute.xlu0 %148
    %150 = vrot.lane.b32.xlu0 %v134, 96
    %v151 = vpop.permute.xlu0 %150
    %vm152 = vcmask 64512
    %v154 = vsel %vm152, %v134, 0
    %v157 = vsel %vm152, %v151, 0
    %159 = vmatprep.subr.bf16.mxu0 0
    %160 = vmatpush1.bf16.xpose.msra.mxu0 %v157
    %161 = vmatprep.subr.bf16.mxu0 0
    %162 = vmatpush1.bf16.xpose.msra.mxu0 0
    %163 = vmatprep.subr.bf16.mxu0 0
    %164 = vmatpush1.bf16.xpose.msra.mxu0 0
    %165 = vmatprep.subr.bf16.mxu0 0
    %166 = vmatpush1.bf16.xpose.msra.mxu0 0
    %167 = vmatprep.subr.bf16.mxu0 0
    %168 = vmatpush1.bf16.xpose.msra.mxu0 0
    %169 = vmatprep.subr.bf16.mxu0 0
    %170 = vmatpush1.bf16.xpose.msra.mxu0 0
    %171 = vmatprep.subr.bf16.mxu0 0
    %172 = vmatpush1.bf16.xpose.msra.mxu0 0
    %173 = vmatprep.subr.bf16.mxu0 0
    %174 = vmatpush1.bf16.xpose.msra.mxu0 0
    %175 = vmatprep.subr.bf16.mxu0 0
    %176 = vmatpush1.bf16.xpose.msra.mxu0 0
    %177 = vmatprep.subr.bf16.mxu0 0
    %178 = vmatpush1.bf16.xpose.msra.mxu0 0
    %179 = vmatprep.subr.bf16.mxu0 0
    %180 = vmatpush1.bf16.xpose.msra.mxu0 0
    %181 = vmatprep.subr.bf16.mxu0 0
    %182 = vmatpush1.bf16.xpose.msra.mxu0 0
    %183 = vmatprep.subr.bf16.mxu0 0
    %184 = vmatpush1.bf16.xpose.msra.mxu0 0
    %185 = vmatprep.subr.bf16.mxu0 0
    %186 = vmatpush1.bf16.xpose.msra.mxu0 0
    %187 = vmatprep.subr.bf16.mxu0 0
    %188 = vmatpush1.bf16.xpose.msra.mxu0 0
    %189 = vmatprep.subr.bf16.mxu0 0
    %190 = vmatpush1.bf16.xpose.msra.mxu0 0
    %191 = vmatprep.mubr.bf16.mxu0 0
    %192 = vmatmul.mubr.bf16.gmra.mrb[0].mxu0 %v154
    %v193 = vpop.f32.mrb[0].mxu0
    %v194 = vadd.f32 0.0, %v193
    %v195 = vpop.f32.mrb[0].mxu0
    %v196 = vpop.f32.mrb[0].mxu0
    %v197 = vpop.f32.mrb[0].mxu0
    %198 = vdwg.mxu0
    %199 = vrot.lane.b32.xlu0 %v139, 96
    %v200 = vpop.permute.xlu0 %199
    %v202 = vsel %vm152, %v139, 0
    %v205 = vsel %vm152, %v200, 0
    %207 = vmatprep.subr.bf16.mxu0 0
    %208 = vmatpush1.bf16.xpose.msra.mxu0 %v205
    %209 = vmatprep.subr.bf16.mxu0 0
    %210 = vmatpush1.bf16.xpose.msra.mxu0 0
    %211 = vmatprep.subr.bf16.mxu0 0
    %212 = vmatpush1.bf16.xpose.msra.mxu0 0
    %213 = vmatprep.subr.bf16.mxu0 0
    %214 = vmatpush1.bf16.xpose.msra.mxu0 0
    %215 = vmatprep.subr.bf16.mxu0 0
    %216 = vmatpush1.bf16.xpose.msra.mxu0 0
    %217 = vmatprep.subr.bf16.mxu0 0
    %218 = vmatpush1.bf16.xpose.msra.mxu0 0
    %219 = vmatprep.subr.bf16.mxu0 0
    %220 = vmatpush1.bf16.xpose.msra.mxu0 0
    %221 = vmatprep.subr.bf16.mxu0 0
    %222 = vmatpush1.bf16.xpose.msra.mxu0 0
    %223 = vmatprep.subr.bf16.mxu0 0
    %224 = vmatpush1.bf16.xpose.msra.mxu0 0
    %225 = vmatprep.subr.bf16.mxu0 0
    %226 = vmatpush1.bf16.xpose.msra.mxu0 0
    %227 = vmatprep.subr.bf16.mxu0 0
    %228 = vmatpush1.bf16.xpose.msra.mxu0 0
    %229 = vmatprep.subr.bf16.mxu0 0
    %230 = vmatpush1.bf16.xpose.msra.mxu0 0
    %231 = vmatprep.subr.bf16.mxu0 0
    %232 = vmatpush1.bf16.xpose.msra.mxu0 0
    %233 = vmatprep.subr.bf16.mxu0 0
    %234 = vmatpush1.bf16.xpose.msra.mxu0 0
    %235 = vmatprep.subr.bf16.mxu0 0
    %236 = vmatpush1.bf16.xpose.msra.mxu0 0
    %237 = vmatprep.subr.bf16.mxu0 0
    %238 = vmatpush1.bf16.xpose.msra.mxu0 0
    %239 = vmatprep.mubr.bf16.mxu0 0
    %240 = vmatmul.mubr.bf16.gmra.mrb[0].mxu0 %v202
    %v241 = vpop.f32.mrb[0].mxu0
    %v242 = vadd.f32 0.0, %v241
    %v243 = vpop.f32.mrb[0].mxu0
    %v244 = vpop.f32.mrb[0].mxu0
    %v245 = vpop.f32.mrb[0].mxu0
    %246 = vdwg.mxu0
    %247 = vrot.lane.b32.xlu0 %v143, 96
    %v248 = vpop.permute.xlu0 %247
    %v250 = vsel %vm152, %v143, 0
    %v253 = vsel %vm152, %v248, 0
    %255 = vmatprep.subr.bf16.mxu0 0
    %256 = vmatpush1.bf16.xpose.msra.mxu0 %v253
    %257 = vmatprep.subr.bf16.mxu0 0
    %258 = vmatpush1.bf16.xpose.msra.mxu0 0
    %259 = vmatprep.subr.bf16.mxu0 0
    %260 = vmatpush1.bf16.xpose.msra.mxu0 0
    %261 = vmatprep.subr.bf16.mxu0 0
    %262 = vmatpush1.bf16.xpose.msra.mxu0 0
    %263 = vmatprep.subr.bf16.mxu0 0
    %264 = vmatpush1.bf16.xpose.msra.mxu0 0
    %265 = vmatprep.subr.bf16.mxu0 0
    %266 = vmatpush1.bf16.xpose.msra.mxu0 0
    %267 = vmatprep.subr.bf16.mxu0 0
    %268 = vmatpush1.bf16.xpose.msra.mxu0 0
    %269 = vmatprep.subr.bf16.mxu0 0
    %270 = vmatpush1.bf16.xpose.msra.mxu0 0
    %271 = vmatprep.subr.bf16.mxu0 0
    %272 = vmatpush1.bf16.xpose.msra.mxu0 0
    %273 = vmatprep.subr.bf16.mxu0 0
    %274 = vmatpush1.bf16.xpose.msra.mxu0 0
    %275 = vmatprep.subr.bf16.mxu0 0
    %276 = vmatpush1.bf16.xpose.msra.mxu0 0
    %277 = vmatprep.subr.bf16.mxu0 0
    %278 = vmatpush1.bf16.xpose.msra.mxu0 0
    %279 = vmatprep.subr.bf16.mxu0 0
    %280 = vmatpush1.bf16.xpose.msra.mxu0 0
    %281 = vmatprep.subr.bf16.mxu0 0
    %282 = vmatpush1.bf16.xpose.msra.mxu0 0
    %283 = vmatprep.subr.bf16.mxu0 0
    %284 = vmatpush1.bf16.xpose.msra.mxu0 0
    %285 = vmatprep.subr.bf16.mxu0 0
    %286 = vmatpush1.bf16.xpose.msra.mxu0 0
    %287 = vmatprep.mubr.bf16.mxu0 0
    %288 = vmatmul.mubr.bf16.gmra.mrb[0].mxu0 %v250
    %v289 = vpop.f32.mrb[0].mxu0
    %v290 = vadd.f32 0.0, %v289
    %v291 = vpop.f32.mrb[0].mxu0
    %v292 = vpop.f32.mrb[0].mxu0
    %v293 = vpop.f32.mrb[0].mxu0
    %294 = vdwg.mxu0
    %295 = vrot.lane.b32.xlu0 %v147, 96
    %v296 = vpop.permute.xlu0 %295
    %v298 = vsel %vm152, %v147, 0
    %v301 = vsel %vm152, %v296, 0
    %303 = vmatprep.subr.bf16.mxu0 0
    %304 = vmatpush1.bf16.xpose.msra.mxu0 %v301
    %305 = vmatprep.subr.bf16.mxu0 0
    %306 = vmatpush1.bf16.xpose.msra.mxu0 0
    %307 = vmatprep.subr.bf16.mxu0 0
    %308 = vmatpush1.bf16.xpose.msra.mxu0 0
    %309 = vmatprep.subr.bf16.mxu0 0
    %310 = vmatpush1.bf16.xpose.msra.mxu0 0
    %311 = vmatprep.subr.bf16.mxu0 0
    %312 = vmatpush1.bf16.xpose.msra.mxu0 0
    %313 = vmatprep.subr.bf16.mxu0 0
    %314 = vmatpush1.bf16.xpose.msra.mxu0 0
    %315 = vmatprep.subr.bf16.mxu0 0
    %316 = vmatpush1.bf16.xpose.msra.mxu0 0
    %317 = vmatprep.subr.bf16.mxu0 0
    %318 = vmatpush1.bf16.xpose.msra.mxu0 0
    %319 = vmatprep.subr.bf16.mxu0 0
    %320 = vmatpush1.bf16.xpose.msra.mxu0 0
    %321 = vmatprep.subr.bf16.mxu0 0
    %322 = vmatpush1.bf16.xpose.msra.mxu0 0
    %323 = vmatprep.subr.bf16.mxu0 0
    %324 = vmatpush1.bf16.xpose.msra.mxu0 0
    %325 = vmatprep.subr.bf16.mxu0 0
    %326 = vmatpush1.bf16.xpose.msra.mxu0 0
    %327 = vmatprep.subr.bf16.mxu0 0
    %328 = vmatpush1.bf16.xpose.msra.mxu0 0
    %329 = vmatprep.subr.bf16.mxu0 0
    %330 = vmatpush1.bf16.xpose.msra.mxu0 0
    %331 = vmatprep.subr.bf16.mxu0 0
    %332 = vmatpush1.bf16.xpose.msra.mxu0 0
    %333 = vmatprep.subr.bf16.mxu0 0
    %334 = vmatpush1.bf16.xpose.msra.mxu0 0
    %335 = vmatprep.mubr.bf16.mxu0 0
    %336 = vmatmul.mubr.bf16.gmra.mrb[0].mxu0 %v298
    %v337 = vpop.f32.mrb[0].mxu0
    %v338 = vadd.f32 0.0, %v337
    %v339 = vpop.f32.mrb[0].mxu0
    %v340 = vpop.f32.mrb[0].mxu0
    %v341 = vpop.f32.mrb[0].mxu0
    %342 = vdwg.mxu0
    %343 = vrot.lane.b32.xlu0 %v135, 96
    %v344 = vpop.permute.xlu0 %343
    %v346 = vsel %vm152, %v135, 0
    %v349 = vsel %vm152, %v344, 0
    %351 = vmatprep.subr.bf16.mxu0 0
    %352 = vmatpush1.bf16.xpose.msra.mxu0 %v349
    %353 = vmatprep.subr.bf16.mxu0 0
    %354 = vmatpush1.bf16.xpose.msra.mxu0 0
    %355 = vmatprep.subr.bf16.mxu0 0
    %356 = vmatpush1.bf16.xpose.msra.mxu0 0
    %357 = vmatprep.subr.bf16.mxu0 0
    %358 = vmatpush1.bf16.xpose.msra.mxu0 0
    %359 = vmatprep.subr.bf16.mxu0 0
    %360 = vmatpush1.bf16.xpose.msra.mxu0 0
    %361 = vmatprep.subr.bf16.mxu0 0
    %362 = vmatpush1.bf16.xpose.msra.mxu0 0
    %363 = vmatprep.subr.bf16.mxu0 0
    %364 = vmatpush1.bf16.xpose.msra.mxu0 0
    %365 = vmatprep.subr.bf16.mxu0 0
    %366 = vmatpush1.bf16.xpose.msra.mxu0 0
    %367 = vmatprep.subr.bf16.mxu0 0
    %368 = vmatpush1.bf16.xpose.msra.mxu0 0
    %369 = vmatprep.subr.bf16.mxu0 0
    %370 = vmatpush1.bf16.xpose.msra.mxu0 0
    %371 = vmatprep.subr.bf16.mxu0 0
    %372 = vmatpush1.bf16.xpose.msra.mxu0 0
    %373 = vmatprep.subr.bf16.mxu0 0
    %374 = vmatpush1.bf16.xpose.msra.mxu0 0
    %375 = vmatprep.subr.bf16.mxu0 0
    %376 = vmatpush1.bf16.xpose.msra.mxu0 0
    %377 = vmatprep.subr.bf16.mxu0 0
    %378 = vmatpush1.bf16.xpose.msra.mxu0 0
    %379 = vmatprep.subr.bf16.mxu0 0
    %380 = vmatpush1.bf16.xpose.msra.mxu0 0
    %381 = vmatprep.subr.bf16.mxu0 0
    %382 = vmatpush1.bf16.xpose.msra.mxu0 0
    %383 = vmatprep.mubr.bf16.mxu0 0
    %384 = vmatmul.mubr.bf16.gmra.mrb[0].mxu0 %v346
    %v385 = vpop.f32.mrb[0].mxu0
    %v386 = vadd.f32 0.0, %v385
    %v387 = vpop.f32.mrb[0].mxu0
    %v388 = vpop.f32.mrb[0].mxu0
    %v389 = vpop.f32.mrb[0].mxu0
    %390 = vdwg.mxu0
    %391 = vrot.lane.b32.xlu0 %v141, 96
    %v392 = vpop.permute.xlu0 %391
    %v394 = vsel %vm152, %v141, 0
    %v397 = vsel %vm152, %v392, 0
    %399 = vmatprep.subr.bf16.mxu0 0
    %400 = vmatpush1.bf16.xpose.msra.mxu0 %v397
    %401 = vmatprep.subr.bf16.mxu0 0
    %402 = vmatpush1.bf16.xpose.msra.mxu0 0
    %403 = vmatprep.subr.bf16.mxu0 0
    %404 = vmatpush1.bf16.xpose.msra.mxu0 0
    %405 = vmatprep.subr.bf16.mxu0 0
    %406 = vmatpush1.bf16.xpose.msra.mxu0 0
    %407 = vmatprep.subr.bf16.mxu0 0
    %408 = vmatpush1.bf16.xpose.msra.mxu0 0
    %409 = vmatprep.subr.bf16.mxu0 0
    %410 = vmatpush1.bf16.xpose.msra.mxu0 0
    %411 = vmatprep.subr.bf16.mxu0 0
    %412 = vmatpush1.bf16.xpose.msra.mxu0 0
    %413 = vmatprep.subr.bf16.mxu0 0
    %414 = vmatpush1.bf16.xpose.msra.mxu0 0
    %415 = vmatprep.subr.bf16.mxu0 0
    %416 = vmatpush1.bf16.xpose.msra.mxu0 0
    %417 = vmatprep.subr.bf16.mxu0 0
    %418 = vmatpush1.bf16.xpose.msra.mxu0 0
    %419 = vmatprep.subr.bf16.mxu0 0
    %420 = vmatpush1.bf16.xpose.msra.mxu0 0
    %421 = vmatprep.subr.bf16.mxu0 0
    %422 = vmatpush1.bf16.xpose.msra.mxu0 0
    %423 = vmatprep.subr.bf16.mxu0 0
    %424 = vmatpush1.bf16.xpose.msra.mxu0 0
    %425 = vmatprep.subr.bf16.mxu0 0
    %426 = vmatpush1.bf16.xpose.msra.mxu0 0
    %427 = vmatprep.subr.bf16.mxu0 0
    %428 = vmatpush1.bf16.xpose.msra.mxu0 0
    %429 = vmatprep.subr.bf16.mxu0 0
    %430 = vmatpush1.bf16.xpose.msra.mxu0 0
    %431 = vmatprep.mubr.bf16.mxu0 0
    %432 = vmatmul.mubr.bf16.gmra.mrb[0].mxu0 %v394
    %v433 = vpop.f32.mrb[0].mxu0
    %v434 = vadd.f32 0.0, %v433
    %v435 = vpop.f32.mrb[0].mxu0
    %v436 = vpop.f32.mrb[0].mxu0
    %v437 = vpop.f32.mrb[0].mxu0
    %438 = vdwg.mxu0
    %439 = vrot.lane.b32.xlu0 %v145, 96
    %v440 = vpop.permute.xlu0 %439
    %v442 = vsel %vm152, %v145, 0
    %v445 = vsel %vm152, %v440, 0
    %447 = vmatprep.subr.bf16.mxu0 0
    %448 = vmatpush1.bf16.xpose.msra.mxu0 %v445
    %449 = vmatprep.subr.bf16.mxu0 0
    %450 = vmatpush1.bf16.xpose.msra.mxu0 0
    %451 = vmatprep.subr.bf16.mxu0 0
    %452 = vmatpush1.bf16.xpose.msra.mxu0 0
    %453 = vmatprep.subr.bf16.mxu0 0
    %454 = vmatpush1.bf16.xpose.msra.mxu0 0
    %455 = vmatprep.subr.bf16.mxu0 0
    %456 = vmatpush1.bf16.xpose.msra.mxu0 0
    %457 = vmatprep.subr.bf16.mxu0 0
    %458 = vmatpush1.bf16.xpose.msra.mxu0 0
    %459 = vmatprep.subr.bf16.mxu0 0
    %460 = vmatpush1.bf16.xpose.msra.mxu0 0
    %461 = vmatprep.subr.bf16.mxu0 0
    %462 = vmatpush1.bf16.xpose.msra.mxu0 0
    %463 = vmatprep.subr.bf16.mxu0 0
    %464 = vmatpush1.bf16.xpose.msra.mxu0 0
    %465 = vmatprep.subr.bf16.mxu0 0
    %466 = vmatpush1.bf16.xpose.msra.mxu0 0
    %467 = vmatprep.subr.bf16.mxu0 0
    %468 = vmatpush1.bf16.xpose.msra.mxu0 0
    %469 = vmatprep.subr.bf16.mxu0 0
    %470 = vmatpush1.bf16.xpose.msra.mxu0 0
    %471 = vmatprep.subr.bf16.mxu0 0
    %472 = vmatpush1.bf16.xpose.msra.mxu0 0
    %473 = vmatprep.subr.bf16.mxu0 0
    %474 = vmatpush1.bf16.xpose.msra.mxu0 0
    %475 = vmatprep.subr.bf16.mxu0 0
    %476 = vmatpush1.bf16.xpose.msra.mxu0 0
    %477 = vmatprep.subr.bf16.mxu0 0
    %478 = vmatpush1.bf16.xpose.msra.mxu0 0
    %479 = vmatprep.mubr.bf16.mxu0 0
    %480 = vmatmul.mubr.bf16.gmra.mrb[0].mxu0 %v442
    %v481 = vpop.f32.mrb[0].mxu0
    %v482 = vadd.f32 0.0, %v481
    %v483 = vpop.f32.mrb[0].mxu0
    %v484 = vpop.f32.mrb[0].mxu0
    %v485 = vpop.f32.mrb[0].mxu0
    %486 = vdwg.mxu0
    %487 = vrot.lane.b32.xlu0 %v149, 96
    %v488 = vpop.permute.xlu0 %487
    %v490 = vsel %vm152, %v149, 0
    %v493 = vsel %vm152, %v488, 0
    %495 = vmatprep.subr.bf16.mxu0 0
    %496 = vmatpush1.bf16.xpose.msra.mxu0 %v493
    %497 = vmatprep.subr.bf16.mxu0 0
    %498 = vmatpush1.bf16.xpose.msra.mxu0 0
    %499 = vmatprep.subr.bf16.mxu0 0
    %500 = vmatpush1.bf16.xpose.msra.mxu0 0
    %501 = vmatprep.subr.bf16.mxu0 0
    %502 = vmatpush1.bf16.xpose.msra.mxu0 0
    %503 = vmatprep.subr.bf16.mxu0 0
    %504 = vmatpush1.bf16.xpose.msra.mxu0 0
    %505 = vmatprep.subr.bf16.mxu0 0
    %506 = vmatpush1.bf16.xpose.msra.mxu0 0
    %507 = vmatprep.subr.bf16.mxu0 0
    %508 = vmatpush1.bf16.xpose.msra.mxu0 0
    %509 = vmatprep.subr.bf16.mxu0 0
    %510 = vmatpush1.bf16.xpose.msra.mxu0 0
    %511 = vmatprep.subr.bf16.mxu0 0
    %512 = vmatpush1.bf16.xpose.msra.mxu0 0
    %513 = vmatprep.subr.bf16.mxu0 0
    %514 = vmatpush1.bf16.xpose.msra.mxu0 0
    %515 = vmatprep.subr.bf16.mxu0 0
    %516 = vmatpush1.bf16.xpose.msra.mxu0 0
    %517 = vmatprep.subr.bf16.mxu0 0
    %518 = vmatpush1.bf16.xpose.msra.mxu0 0
    %519 = vmatprep.subr.bf16.mxu0 0
    %520 = vmatpush1.bf16.xpose.msra.mxu0 0
    %521 = vmatprep.subr.bf16.mxu0 0
    %522 = vmatpush1.bf16.xpose.msra.mxu0 0
    %523 = vmatprep.subr.bf16.mxu0 0
    %524 = vmatpush1.bf16.xpose.msra.mxu0 0
    %525 = vmatprep.subr.bf16.mxu0 0
    %526 = vmatpush1.bf16.xpose.msra.mxu0 0
    %527 = vmatprep.mubr.bf16.mxu0 0
    %528 = vmatmul.mubr.bf16.gmra.mrb[0].mxu0 %v490
    %v529 = vpop.f32.mrb[0].mxu0
    %v530 = vadd.f32 0.0, %v529
    %v531 = vpop.f32.mrb[0].mxu0
    %v532 = vpop.f32.mrb[0].mxu0
    %v533 = vpop.f32.mrb[0].mxu0
    %534 = vdwg.mxu0
    %v535 = vsel %vm152, %v194, -inf
    %536 = vmax.xlane.f32.xlu0 %v535
    %v537 = vpop.xlane.xlu0 %536
    %v538 = vsel %vm152, %v242, -inf
    %539 = vmax.xlane.f32.xlu0 %v538
    %v540 = vpop.xlane.xlu0 %539
    %v541 = vsel %vm152, %v290, -inf
    %542 = vmax.xlane.f32.xlu0 %v541
    %v543 = vpop.xlane.xlu0 %542
    %v544 = vsel %vm152, %v338, -inf
    %545 = vmax.xlane.f32.xlu0 %v544
    %v546 = vpop.xlane.xlu0 %545
    %v547 = vsel %vm152, %v386, -inf
    %548 = vmax.xlane.f32.xlu0 %v547
    %v549 = vpop.xlane.xlu0 %548
    %v550 = vsel %vm152, %v434, -inf
    %551 = vmax.xlane.f32.xlu0 %v550
    %v552 = vpop.xlane.xlu0 %551
    %v553 = vsel %vm152, %v482, -inf
    %554 = vmax.xlane.f32.xlu0 %v553
    %v555 = vpop.xlane.xlu0 %554
    %v556 = vsel %vm152, %v530, -inf
    %557 = vmax.xlane.f32.xlu0 %v556
    %v558 = vpop.xlane.xlu0 %557
    %v559 = vsub.f32 %v194, %v537
    %v560 = vsub.f32 %v242, %v540
    %v561 = vsub.f32 %v290, %v543
    %v562 = vsub.f32 %v338, %v546
    %v563 = vsub.f32 %v386, %v549
    %v564 = vsub.f32 %v434, %v552
    %v565 = vsub.f32 %v482, %v555
    %v566 = vsub.f32 %v530, %v558
    %v567 = vmul.f32 %v559, 1.442695
    %v568 = vpow.pop %v567
    %v569 = vmul.f32 %v560, 1.442695
    %v570 = vpow.pop %v569
    %v571 = vmul.f32 %v561, 1.442695
    %v572 = vpow.pop %v571
    %v573 = vmul.f32 %v562, 1.442695
    %v574 = vpow.pop %v573
    %v575 = vmul.f32 %v563, 1.442695
    %v576 = vpow.pop %v575
    %v577 = vmul.f32 %v564, 1.442695
    %v578 = vpow.pop %v577
    %v579 = vmul.f32 %v565, 1.442695
    %v580 = vpow.pop %v579
    %v581 = vmul.f32 %v566, 1.442695
    %v582 = vpow.pop %v581
    %v583 = vsel %vm152, %v568, 0.0
    %584 = vadd.xlane.f32.xlu0 %v583
    %v585 = vpop.xlane.xlu0 %584
    %v586 = vsel %vm152, %v570, 0.0
    %587 = vadd.xlane.f32.xlu0 %v586
    %v588 = vpop.xlane.xlu0 %587
    %v589 = vsel %vm152, %v572, 0.0
    %590 = vadd.xlane.f32.xlu0 %v589
    %v591 = vpop.xlane.xlu0 %590
    %v592 = vsel %vm152, %v574, 0.0
    %593 = vadd.xlane.f32.xlu0 %v592
    %v594 = vpop.xlane.xlu0 %593
    %v595 = vsel %vm152, %v576, 0.0
    %596 = vadd.xlane.f32.xlu0 %v595
    %v597 = vpop.xlane.xlu0 %596
    %v598 = vsel %vm152, %v578, 0.0
    %599 = vadd.xlane.f32.xlu0 %v598
    %v600 = vpop.xlane.xlu0 %599
    %v601 = vsel %vm152, %v580, 0.0
    %602 = vadd.xlane.f32.xlu0 %v601
    %v603 = vpop.xlane.xlu0 %602
    %v604 = vsel %vm152, %v582, 0.0
    %605 = vadd.xlane.f32.xlu0 %v604
    %v606 = vpop.xlane.xlu0 %605
    %v607 = vrcp.pop %v585
    %v608 = vmul.f32 %v568, %v607
    %v609 = vrcp.pop %v588
    %v610 = vmul.f32 %v570, %v609
    %v611 = vrcp.pop %v591
    %v612 = vmul.f32 %v572, %v611
    %v613 = vrcp.pop %v594
    %v614 = vmul.f32 %v574, %v613
    %v615 = vrcp.pop %v597
    %v616 = vmul.f32 %v576, %v615
    %v617 = vrcp.pop %v600
    %v618 = vmul.f32 %v578, %v617
    %v619 = vrcp.pop %v603
    %v620 = vmul.f32 %v580, %v619
    %v621 = vrcp.pop %v606
    %v622 = vmul.f32 %v582, %v621
    %623 = vst.msk [vmem:[#allocation6] sm:$0xff] %vm152, %v608
    %624 = vst.msk [vmem:[#allocation6 + $0x8] sm:$0xff] %vm152, %v610
    %625 = vst.msk [vmem:[#allocation6 + $0x10] sm:$0xff] %vm152, %v612
    %626 = vst.msk [vmem:[#allocation6 + $0x18] sm:$0xff] %vm152, %v614
    %627 = vst.msk [vmem:[#allocation6 + $0x20] sm:$0xff] %vm152, %v616
    %628 = vst.msk [vmem:[#allocation6 + $0x28] sm:$0xff] %vm152, %v618
    %629 = vst.msk [vmem:[#allocation6 + $0x30] sm:$0xff] %vm152, %v620
    %630 = vst.msk [vmem:[#allocation6 + $0x38] sm:$0xff] %vm152, %v622
    %v631 = vpack.c.bf16 %v608, %v608
    %v632 = vpack.c.bf16 %v610, %v610
    %v633 = vpack.c.bf16 %v612, %v612
    %v634 = vpack.c.bf16 %v614, %v614
    %v635 = vpack.c.bf16 %v616, %v616
    %v636 = vpack.c.bf16 %v618, %v618
    %v637 = vpack.c.bf16 %v620, %v620
    %v638 = vpack.c.bf16 %v622, %v622
    %639 = vrot.lane.b32.xlu0 %v134, 64
    %v640 = vpop.permute.xlu0 %639
    %v642 = vsel %vm152, %v631, 0
    %vm644 = vcmask 1043456
    %v646 = vsel %vm644, %v640, 0
    %648 = vmatprep.subr.bf16.mxu0 0
    %649 = vmatpush1.bf16.msra.mxu0 %v646
    %650 = vmatprep.subr.bf16.mxu0 0
    %651 = vmatpush1.bf16.msra.mxu0 0
    %652 = vmatprep.subr.bf16.mxu0 0
    %653 = vmatpush1.bf16.msra.mxu0 0
    %654 = vmatprep.subr.bf16.mxu0 0
    %655 = vmatpush1.bf16.msra.mxu0 0
    %656 = vmatprep.subr.bf16.mxu0 0
    %657 = vmatpush1.bf16.msra.mxu0 0
    %658 = vmatprep.subr.bf16.mxu0 0
    %659 = vmatpush1.bf16.msra.mxu0 0
    %660 = vmatprep.subr.bf16.mxu0 0
    %661 = vmatpush1.bf16.msra.mxu0 0
    %662 = vmatprep.subr.bf16.mxu0 0
    %663 = vmatpush1.bf16.msra.mxu0 0
    %664 = vmatprep.subr.bf16.mxu0 0
    %665 = vmatpush1.bf16.msra.mxu0 0
    %666 = vmatprep.subr.bf16.mxu0 0
    %667 = vmatpush1.bf16.msra.mxu0 0
    %668 = vmatprep.subr.bf16.mxu0 0
    %669 = vmatpush1.bf16.msra.mxu0 0
    %670 = vmatprep.subr.bf16.mxu0 0
    %671 = vmatpush1.bf16.msra.mxu0 0
    %672 = vmatprep.subr.bf16.mxu0 0
    %673 = vmatpush1.bf16.msra.mxu0 0
    %674 = vmatprep.subr.bf16.mxu0 0
    %675 = vmatpush1.bf16.msra.mxu0 0
    %676 = vmatprep.subr.bf16.mxu0 0
    %677 = vmatpush1.bf16.msra.mxu0 0
    %678 = vmatprep.subr.bf16.mxu0 0
    %679 = vmatpush1.bf16.msra.mxu0 0
    %680 = vmatprep.mubr.bf16.mxu0 0
    %681 = vmatmul.mubr.bf16.gmra.mrb[0].mxu0 %v642
    %v682 = vpop.f32.mrb[0].mxu0
    %v683 = vadd.f32 0.0, %v682
    %v684 = vpop.f32.mrb[0].mxu0
    %v685 = vpop.f32.mrb[0].mxu0
    %v686 = vpop.f32.mrb[0].mxu0
    %687 = vdwg.mxu0
    %688 = vrot.lane.b32.xlu0 %v139, 64
    %v689 = vpop.permute.xlu0 %688
    %v691 = vsel %vm152, %v632, 0
    %v694 = vsel %vm644, %v689, 0
    %696 = vmatprep.subr.bf16.mxu0 0
    %697 = vmatpush1.bf16.msra.mxu0 %v694
    %698 = vmatprep.subr.bf16.mxu0 0
    %699 = vmatpush1.bf16.msra.mxu0 0
    %700 = vmatprep.subr.bf16.mxu0 0
    %701 = vmatpush1.bf16.msra.mxu0 0
    %702 = vmatprep.subr.bf16.mxu0 0
    %703 = vmatpush1.bf16.msra.mxu0 0
    %704 = vmatprep.subr.bf16.mxu0 0
    %705 = vmatpush1.bf16.msra.mxu0 0
    %706 = vmatprep.subr.bf16.mxu0 0
    %707 = vmatpush1.bf16.msra.mxu0 0
    %708 = vmatprep.subr.bf16.mxu0 0
    %709 = vmatpush1.bf16.msra.mxu0 0
    %710 = vmatprep.subr.bf16.mxu0 0
    %711 = vmatpush1.bf16.msra.mxu0 0
    %712 = vmatprep.subr.bf16.mxu0 0
    %713 = vmatpush1.bf16.msra.mxu0 0
    %714 = vmatprep.subr.bf16.mxu0 0
    %715 = vmatpush1.bf16.msra.mxu0 0
    %716 = vmatprep.subr.bf16.mxu0 0
    %717 = vmatpush1.bf16.msra.mxu0 0
    %718 = vmatprep.subr.bf16.mxu0 0
    %719 = vmatpush1.bf16.msra.mxu0 0
    %720 = vmatprep.subr.bf16.mxu0 0
    %721 = vmatpush1.bf16.msra.mxu0 0
    %722 = vmatprep.subr.bf16.mxu0 0
    %723 = vmatpush1.bf16.msra.mxu0 0
    %724 = vmatprep.subr.bf16.mxu0 0
    %725 = vmatpush1.bf16.msra.mxu0 0
    %726 = vmatprep.subr.bf16.mxu0 0
    %727 = vmatpush1.bf16.msra.mxu0 0
    %728 = vmatprep.mubr.bf16.mxu0 0
    %729 = vmatmul.mubr.bf16.gmra.mrb[0].mxu0 %v691
    %v730 = vpop.f32.mrb[0].mxu0
    %v731 = vadd.f32 0.0, %v730
    %v732 = vpop.f32.mrb[0].mxu0
    %v733 = vpop.f32.mrb[0].mxu0
    %v734 = vpop.f32.mrb[0].mxu0
    %735 = vdwg.mxu0
    %736 = vrot.lane.b32.xlu0 %v143, 64
    %v737 = vpop.permute.xlu0 %736
    %v739 = vsel %vm152, %v633, 0
    %v742 = vsel %vm644, %v737, 0
    %744 = vmatprep.subr.bf16.mxu0 0
    %745 = vmatpush1.bf16.msra.mxu0 %v742
    %746 = vmatprep.subr.bf16.mxu0 0
    %747 = vmatpush1.bf16.msra.mxu0 0
    %748 = vmatprep.subr.bf16.mxu0 0
    %749 = vmatpush1.bf16.msra.mxu0 0
    %750 = vmatprep.subr.bf16.mxu0 0
    %751 = vmatpush1.bf16.msra.mxu0 0
    %752 = vmatprep.subr.bf16.mxu0 0
    %753 = vmatpush1.bf16.msra.mxu0 0
    %754 = vmatprep.subr.bf16.mxu0 0
    %755 = vmatpush1.bf16.msra.mxu0 0
    %756 = vmatprep.subr.bf16.mxu0 0
    %757 = vmatpush1.bf16.msra.mxu0 0
    %758 = vmatprep.subr.bf16.mxu0 0
    %759 = vmatpush1.bf16.msra.mxu0 0
    %760 = vmatprep.subr.bf16.mxu0 0
    %761 = vmatpush1.bf16.msra.mxu0 0
    %762 = vmatprep.subr.bf16.mxu0 0
    %763 = vmatpush1.bf16.msra.mxu0 0
    %764 = vmatprep.subr.bf16.mxu0 0
    %765 = vmatpush1.bf16.msra.mxu0 0
    %766 = vmatprep.subr.bf16.mxu0 0
    %767 = vmatpush1.bf16.msra.mxu0 0
    %768 = vmatprep.subr.bf16.mxu0 0
    %769 = vmatpush1.bf16.msra.mxu0 0
    %770 = vmatprep.subr.bf16.mxu0 0
    %771 = vmatpush1.bf16.msra.mxu0 0
    %772 = vmatprep.subr.bf16.mxu0 0
    %773 = vmatpush1.bf16.msra.mxu0 0
    %774 = vmatprep.subr.bf16.mxu0 0
    %775 = vmatpush1.bf16.msra.mxu0 0
    %776 = vmatprep.mubr.bf16.mxu0 0
    %777 = vmatmul.mubr.bf16.gmra.mrb[0].mxu0 %v739
    %v778 = vpop.f32.mrb[0].mxu0
    %v779 = vadd.f32 0.0, %v778
    %v780 = vpop.f32.mrb[0].mxu0
    %v781 = vpop.f32.mrb[0].mxu0
    %v782 = vpop.f32.mrb[0].mxu0
    %783 = vdwg.mxu0
    %784 = vrot.lane.b32.xlu0 %v147, 64
    %v785 = vpop.permute.xlu0 %784
    %v787 = vsel %vm152, %v634, 0
    %v790 = vsel %vm644, %v785, 0
    %792 = vmatprep.subr.bf16.mxu0 0
    %793 = vmatpush1.bf16.msra.mxu0 %v790
    %794 = vmatprep.subr.bf16.mxu0 0
    %795 = vmatpush1.bf16.msra.mxu0 0
    %796 = vmatprep.subr.bf16.mxu0 0
    %797 = vmatpush1.bf16.msra.mxu0 0
    %798 = vmatprep.subr.bf16.mxu0 0
    %799 = vmatpush1.bf16.msra.mxu0 0
    %800 = vmatprep.subr.bf16.mxu0 0
    %801 = vmatpush1.bf16.msra.mxu0 0
    %802 = vmatprep.subr.bf16.mxu0 0
    %803 = vmatpush1.bf16.msra.mxu0 0
    %804 = vmatprep.subr.bf16.mxu0 0
    %805 = vmatpush1.bf16.msra.mxu0 0
    %806 = vmatprep.subr.bf16.mxu0 0
    %807 = vmatpush1.bf16.msra.mxu0 0
    %808 = vmatprep.subr.bf16.mxu0 0
    %809 = vmatpush1.bf16.msra.mxu0 0
    %810 = vmatprep.subr.bf16.mxu0 0
    %811 = vmatpush1.bf16.msra.mxu0 0
    %812 = vmatprep.subr.bf16.mxu0 0
    %813 = vmatpush1.bf16.msra.mxu0 0
    %814 = vmatprep.subr.bf16.mxu0 0
    %815 = vmatpush1.bf16.msra.mxu0 0
    %816 = vmatprep.subr.bf16.mxu0 0
    %817 = vmatpush1.bf16.msra.mxu0 0
    %818 = vmatprep.subr.bf16.mxu0 0
    %819 = vmatpush1.bf16.msra.mxu0 0
    %820 = vmatprep.subr.bf16.mxu0 0
    %821 = vmatpush1.bf16.msra.mxu0 0
    %822 = vmatprep.subr.bf16.mxu0 0
    %823 = vmatpush1.bf16.msra.mxu0 0
    %824 = vmatprep.mubr.bf16.mxu0 0
    %825 = vmatmul.mubr.bf16.gmra.mrb[0].mxu0 %v787
    %v826 = vpop.f32.mrb[0].mxu0
    %v827 = vadd.f32 0.0, %v826
    %v828 = vpop.f32.mrb[0].mxu0
    %v829 = vpop.f32.mrb[0].mxu0
    %v830 = vpop.f32.mrb[0].mxu0
    %831 = vdwg.mxu0
    %832 = vrot.lane.b32.xlu0 %v135, 64
    %v833 = vpop.permute.xlu0 %832
    %v835 = vsel %vm152, %v635, 0
    %v838 = vsel %vm644, %v833, 0
    %840 = vmatprep.subr.bf16.mxu0 0
    %841 = vmatpush1.bf16.msra.mxu0 %v838
    %842 = vmatprep.subr.bf16.mxu0 0
    %843 = vmatpush1.bf16.msra.mxu0 0
    %844 = vmatprep.subr.bf16.mxu0 0
    %845 = vmatpush1.bf16.msra.mxu0 0
    %846 = vmatprep.subr.bf16.mxu0 0
    %847 = vmatpush1.bf16.msra.mxu0 0
    %848 = vmatprep.subr.bf16.mxu0 0
    %849 = vmatpush1.bf16.msra.mxu0 0
    %850 = vmatprep.subr.bf16.mxu0 0
    %851 = vmatpush1.bf16.msra.mxu0 0
    %852 = vmatprep.subr.bf16.mxu0 0
    %853 = vmatpush1.bf16.msra.mxu0 0
    %854 = vmatprep.subr.bf16.mxu0 0
    %855 = vmatpush1.bf16.msra.mxu0 0
    %856 = vmatprep.subr.bf16.mxu0 0
    %857 = vmatpush1.bf16.msra.mxu0 0
    %858 = vmatprep.subr.bf16.mxu0 0
    %859 = vmatpush1.bf16.msra.mxu0 0
    %860 = vmatprep.subr.bf16.mxu0 0
    %861 = vmatpush1.bf16.msra.mxu0 0
    %862 = vmatprep.subr.bf16.mxu0 0
    %863 = vmatpush1.bf16.msra.mxu0 0
    %864 = vmatprep.subr.bf16.mxu0 0
    %865 = vmatpush1.bf16.msra.mxu0 0
    %866 = vmatprep.subr.bf16.mxu0 0
    %867 = vmatpush1.bf16.msra.mxu0 0
    %868 = vmatprep.subr.bf16.mxu0 0
    %869 = vmatpush1.bf16.msra.mxu0 0
    %870 = vmatprep.subr.bf16.mxu0 0
    %871 = vmatpush1.bf16.msra.mxu0 0
    %872 = vmatprep.mubr.bf16.mxu0 0
    %873 = vmatmul.mubr.bf16.gmra.mrb[0].mxu0 %v835
    %v874 = vpop.f32.mrb[0].mxu0
    %v875 = vadd.f32 0.0, %v874
    %v876 = vpop.f32.mrb[0].mxu0
    %v877 = vpop.f32.mrb[0].mxu0
    %v878 = vpop.f32.mrb[0].mxu0
    %879 = vdwg.mxu0
    %880 = vrot.lane.b32.xlu0 %v141, 64
    %v881 = vpop.permute.xlu0 %880
    %v883 = vsel %vm152, %v636, 0
    %v886 = vsel %vm644, %v881, 0
    %888 = vmatprep.subr.bf16.mxu0 0
    %889 = vmatpush1.bf16.msra.mxu0 %v886
    %890 = vmatprep.subr.bf16.mxu0 0
    %891 = vmatpush1.bf16.msra.mxu0 0
    %892 = vmatprep.subr.bf16.mxu0 0
    %893 = vmatpush1.bf16.msra.mxu0 0
    %894 = vmatprep.subr.bf16.mxu0 0
    %895 = vmatpush1.bf16.msra.mxu0 0
    %896 = vmatprep.subr.bf16.mxu0 0
    %897 = vmatpush1.bf16.msra.mxu0 0
    %898 = vmatprep.subr.bf16.mxu0 0
    %899 = vmatpush1.bf16.msra.mxu0 0
    %900 = vmatprep.subr.bf16.mxu0 0
    %901 = vmatpush1.bf16.msra.mxu0 0
    %902 = vmatprep.subr.bf16.mxu0 0
    %903 = vmatpush1.bf16.msra.mxu0 0
    %904 = vmatprep.subr.bf16.mxu0 0
    %905 = vmatpush1.bf16.msra.mxu0 0
    %906 = vmatprep.subr.bf16.mxu0 0
    %907 = vmatpush1.bf16.msra.mxu0 0
    %908 = vmatprep.subr.bf16.mxu0 0
    %909 = vmatpush1.bf16.msra.mxu0 0
    %910 = vmatprep.subr.bf16.mxu0 0
    %911 = vmatpush1.bf16.msra.mxu0 0
    %912 = vmatprep.subr.bf16.mxu0 0
    %913 = vmatpush1.bf16.msra.mxu0 0
    %914 = vmatprep.subr.bf16.mxu0 0
    %915 = vmatpush1.bf16.msra.mxu0 0
    %916 = vmatprep.subr.bf16.mxu0 0
    %917 = vmatpush1.bf16.msra.mxu0 0
    %918 = vmatprep.subr.bf16.mxu0 0
    %919 = vmatpush1.bf16.msra.mxu0 0
    %920 = vmatprep.mubr.bf16.mxu0 0
    %921 = vmatmul.mubr.bf16.gmra.mrb[0].mxu0 %v883
    %v922 = vpop.f32.mrb[0].mxu0
    %v923 = vadd.f32 0.0, %v922
    %v924 = vpop.f32.mrb[0].mxu0
    %v925 = vpop.f32.mrb[0].mxu0
    %v926 = vpop.f32.mrb[0].mxu0
    %927 = vdwg.mxu0
    %928 = vrot.lane.b32.xlu0 %v145, 64
    %v929 = vpop.permute.xlu0 %928
    %v931 = vsel %vm152, %v637, 0
    %v934 = vsel %vm644, %v929, 0
    %936 = vmatprep.subr.bf16.mxu0 0
    %937 = vmatpush1.bf16.msra.mxu0 %v934
    %938 = vmatprep.subr.bf16.mxu0 0
    %939 = vmatpush1.bf16.msra.mxu0 0
    %940 = vmatprep.subr.bf16.mxu0 0
    %941 = vmatpush1.bf16.msra.mxu0 0
    %942 = vmatprep.subr.bf16.mxu0 0
    %943 = vmatpush1.bf16.msra.mxu0 0
    %944 = vmatprep.subr.bf16.mxu0 0
    %945 = vmatpush1.bf16.msra.mxu0 0
    %946 = vmatprep.subr.bf16.mxu0 0
    %947 = vmatpush1.bf16.msra.mxu0 0
    %948 = vmatprep.subr.bf16.mxu0 0
    %949 = vmatpush1.bf16.msra.mxu0 0
    %950 = vmatprep.subr.bf16.mxu0 0
    %951 = vmatpush1.bf16.msra.mxu0 0
    %952 = vmatprep.subr.bf16.mxu0 0
    %953 = vmatpush1.bf16.msra.mxu0 0
    %954 = vmatprep.subr.bf16.mxu0 0
    %955 = vmatpush1.bf16.msra.mxu0 0
    %956 = vmatprep.subr.bf16.mxu0 0
    %957 = vmatpush1.bf16.msra.mxu0 0
    %958 = vmatprep.subr.bf16.mxu0 0
    %959 = vmatpush1.bf16.msra.mxu0 0
    %960 = vmatprep.subr.bf16.mxu0 0
    %961 = vmatpush1.bf16.msra.mxu0 0
    %962 = vmatprep.subr.bf16.mxu0 0
    %963 = vmatpush1.bf16.msra.mxu0 0
    %964 = vmatprep.subr.bf16.mxu0 0
    %965 = vmatpush1.bf16.msra.mxu0 0
    %966 = vmatprep.subr.bf16.mxu0 0
    %967 = vmatpush1.bf16.msra.mxu0 0
    %968 = vmatprep.mubr.bf16.mxu0 0
    %969 = vmatmul.mubr.bf16.gmra.mrb[0].mxu0 %v931
    %v970 = vpop.f32.mrb[0].mxu0
    %v971 = vadd.f32 0.0, %v970
    %v972 = vpop.f32.mrb[0].mxu0
    %v973 = vpop.f32.mrb[0].mxu0
    %v974 = vpop.f32.mrb[0].mxu0
    %975 = vdwg.mxu0
    %976 = vrot.lane.b32.xlu0 %v149, 64
    %v977 = vpop.permute.xlu0 %976
    %v979 = vsel %vm152, %v638, 0
    %v982 = vsel %vm644, %v977, 0
    %984 = vmatprep.subr.bf16.mxu0 0
    %985 = vmatpush1.bf16.msra.mxu0 %v982
    %986 = vmatprep.subr.bf16.mxu0 0
    %987 = vmatpush1.bf16.msra.mxu0 0
    %988 = vmatprep.subr.bf16.mxu0 0
    %989 = vmatpush1.bf16.msra.mxu0 0
    %990 = vmatprep.subr.bf16.mxu0 0
    %991 = vmatpush1.bf16.msra.mxu0 0
    %992 = vmatprep.subr.bf16.mxu0 0
    %993 = vmatpush1.bf16.msra.mxu0 0
    %994 = vmatprep.subr.bf16.mxu0 0
    %995 = vmatpush1.bf16.msra.mxu0 0
    %996 = vmatprep.subr.bf16.mxu0 0
    %997 = vmatpush1.bf16.msra.mxu0 0
    %998 = vmatprep.subr.bf16.mxu0 0
    %999 = vmatpush1.bf16.msra.mxu0 0
    %1000 = vmatprep.subr.bf16.mxu0 0
    %1001 = vmatpush1.bf16.msra.mxu0 0
    %1002 = vmatprep.subr.bf16.mxu0 0
    %1003 = vmatpush1.bf16.msra.mxu0 0
    %1004 = vmatprep.subr.bf16.mxu0 0
    %1005 = vmatpush1.bf16.msra.mxu0 0
    %1006 = vmatprep.subr.bf16.mxu0 0
    %1007 = vmatpush1.bf16.msra.mxu0 0
    %1008 = vmatprep.subr.bf16.mxu0 0
    %1009 = vmatpush1.bf16.msra.mxu0 0
    %1010 = vmatprep.subr.bf16.mxu0 0
    %1011 = vmatpush1.bf16.msra.mxu0 0
    %1012 = vmatprep.subr.bf16.mxu0 0
    %1013 = vmatpush1.bf16.msra.mxu0 0
    %1014 = vmatprep.subr.bf16.mxu0 0
    %1015 = vmatpush1.bf16.msra.mxu0 0
    %1016 = vmatprep.mubr.bf16.mxu0 0
    %1017 = vmatmul.mubr.bf16.gmra.mrb[0].mxu0 %v979
    %v1018 = vpop.f32.mrb[0].mxu0
    %v1019 = vadd.f32 0.0, %v1018
    %v1020 = vpop.f32.mrb[0].mxu0
    %v1021 = vpop.f32.mrb[0].mxu0
    %v1022 = vpop.f32.mrb[0].mxu0
    %1023 = vdwg.mxu0
    %v1024 = vpack.c.bf16 %v683, %v683
    %v1025 = vpack.c.bf16 %v731, %v731
    %v1026 = vpack.c.bf16 %v779, %v779
    %v1027 = vpack.c.bf16 %v827, %v827
    %v1028 = vpack.c.bf16 %v875, %v875
    %v1029 = vpack.c.bf16 %v923, %v923
    %v1030 = vpack.c.bf16 %v971, %v971
    %v1031 = vpack.c.bf16 %v1019, %v1019
    %1034 = vrot.lane.b32.xlu0 %v1025, 8
    %v1035 = vpop.permute.xlu0 %1034
    %1036 = vrot.lane.b32.xlu0 %v1029, 8
    %v1037 = vpop.permute.xlu0 %1036
    %1040 = vrot.lane.b32.xlu0 %v1026, 16
    %v1041 = vpop.permute.xlu0 %1040
    %1042 = vrot.lane.b32.xlu0 %v1030, 16
    %v1043 = vpop.permute.xlu0 %1042
    %1046 = vrot.lane.b32.xlu0 %v1027, 24
    %v1047 = vpop.permute.xlu0 %1046
    %1048 = vrot.lane.b32.xlu0 %v1031, 24
    %v1049 = vpop.permute.xlu0 %1048
    %v1052 = vsel %vm152, %v1024, %v1035
    %v1055 = vsel %vm152, %v1028, %v1037
    %vm1056 = vcmask 130048
    %v1058 = vsel %vm1056, %v1052, %v1041
    %v1060 = vsel %vm1056, %v1055, %v1043
    %vm1061 = vcmask 195584
    %v1063 = vsel %vm1061, %v1058, %v1047
    %v1065 = vsel %vm1061, %v1060, %v1049
    %v1066 = vld [vmem:[%s3] sm:$0xf]
    %v1067 = vld [vmem:[%s3 + $0x4] sm:$0xf]
    %v1068 = vld [vmem:[%s3 + $0x8] sm:$0xf]
    %v1069 = vld [vmem:[%s3 + $0xc] sm:$0xf]
    %v1070 = vld [vmem:[%s4] sm:$0x1]
    %v1072 = vlaneseq
    %v1073 = vshrl.u32 %v1072, 7
    %v1074 = vsub.s32 0, %v1073
    %v1075 = vrot.slane %v1070, %v1074
    %v1079 = vunpack.c.l.b16 %v1063
    %v1080 = vunpack.c.l.b16 %v1065
    %v1081 = vpack.c.b16 %v1080, %v1079
    %v1086 = vunpack.c.l.b16 %v1066
    %v1087 = vunpack.c.l.b16 %v1067
    %v1088 = vunpack.c.l.b16 %v1068
    %v1089 = vunpack.c.l.b16 %v1069
    %v1090 = vpack.c.b16 %v1087, %v1086
    %v1091 = vpack.c.b16 %v1089, %v1088
    %v1095 = vsel %vm89, %v1081, 0
    %1097 = vmatprep.subr.bf16.mxu0 0
    %1098 = vmatpush1.bf16.msra.mxu0 %v1090
    %1099 = vmatprep.subr.bf16.mxu0 0
    %1100 = vmatpush1.bf16.msra.mxu0 %v1091
    %1101 = vmatprep.subr.bf16.mxu0 0
    %1102 = vmatpush1.bf16.msra.mxu0 0
    %1103 = vmatprep.subr.bf16.mxu0 0
    %1104 = vmatpush1.bf16.msra.mxu0 0
    %1105 = vmatprep.subr.bf16.mxu0 0
    %1106 = vmatpush1.bf16.msra.mxu0 0
    %1107 = vmatprep.subr.bf16.mxu0 0
    %1108 = vmatpush1.bf16.msra.mxu0 0
    %1109 = vmatprep.subr.bf16.mxu0 0
    %1110 = vmatpush1.bf16.msra.mxu0 0
    %1111 = vmatprep.subr.bf16.mxu0 0
    %1112 = vmatpush1.bf16.msra.mxu0 0
    %1113 = vmatprep.subr.bf16.mxu0 0
    %1114 = vmatpush1.bf16.msra.mxu0 0
    %1115 = vmatprep.subr.bf16.mxu0 0
    %1116 = vmatpush1.bf16.msra.mxu0 0
    %1117 = vmatprep.subr.bf16.mxu0 0
    %1118 = vmatpush1.bf16.msra.mxu0 0
    %1119 = vmatprep.subr.bf16.mxu0 0
    %1120 = vmatpush1.bf16.msra.mxu0 0
    %1121 = vmatprep.subr.bf16.mxu0 0
    %1122 = vmatpush1.bf16.msra.mxu0 0
    %1123 = vmatprep.subr.bf16.mxu0 0
    %1124 = vmatpush1.bf16.msra.mxu0 0
    %1125 = vmatprep.subr.bf16.mxu0 0
    %1126 = vmatpush1.bf16.msra.mxu0 0
    %1127 = vmatprep.subr.bf16.mxu0 0
    %1128 = vmatpush1.bf16.msra.mxu0 0
    %1129 = vmatprep.mubr.bf16.mxu0 0
    %1130 = vmatmul.mubr.bf16.gmra.mrb[0].mxu0 %v1095
    %v1131 = vpop.f32.mrb[0].mxu0
    %v1132 = vadd.f32 %v1075, %v1131
    %v1133 = vpop.f32.mrb[0].mxu0
    %v1134 = vpop.f32.mrb[0].mxu0
    %v1135 = vadd.f32 %v1075, %v1134
    %v1136 = vpop.f32.mrb[0].mxu0
    %1137 = vdwg.mxu0
    %v1138 = vadd.f32 %v63, %v1132
    %v1139 = vadd.f32 %v64, %v1135
    %v1140 = vld [vmem:[%s5] sm:$0x1]
    %v1141 = vld [vmem:[%s6] sm:$0x1]
    %v1142 = vsel %vm89, %v1138, 0.0
    %v1143 = vsel %vm89, %v1139, 0.0
    %v1144 = vadd.f32 %v1142, %v1143
    %v1145 = vrot.slane %v1144, 4
    %v1146 = vadd.f32 %v1144, %v1145
    %v1147 = vrot.slane %v1146, 2
    %v1148 = vadd.f32 %v1146, %v1147
    %v1149 = vrot.slane %v1148, 1
    %v1150 = vadd.f32 %v1148, %v1149
    %v1151 = vrcp.pop 16.0
    %v1152 = vmul.f32 %v1150, %v1151
    %v1153 = vsub.f32 %v1138, %v1152
    %v1154 = vsub.f32 %v1139, %v1152
    %v1155 = vmul.f32 %v1153, %v1153
    %v1156 = vmul.f32 %v1154, %v1154
    %v1157 = vsel %vm89, %v1155, 0.0
    %v1158 = vsel %vm89, %v1156, 0.0
    %v1159 = vadd.f32 %v1157, %v1158
    %v1160 = vrot.slane %v1159, 4
    %v1161 = vadd.f32 %v1159, %v1160
    %v1162 = vrot.slane %v1161, 2
    %v1163 = vadd.f32 %v1161, %v1162
    %v1164 = vrot.slane %v1163, 1
    %v1165 = vadd.f32 %v1163, %v1164
    %v1166 = vmul.f32 %v1165, %v1151
    %v1167 = vadd.f32 %v1166, 1e-05
    %v1168 = vrsqrt.pop %v1167
    %v1169 = vmul.f32 %v1153, %v1168
    %v1170 = vmul.f32 %v1154, %v1168
    %v1172 = vlaneseq
    %v1173 = vshrl.u32 %v1172, 7
    %v1174 = vsub.s32 0, %v1173
    %v1175 = vrot.slane %v1140, %v1174
    %v1177 = vmul.f32 %v1169, %v1175
    %v1178 = vmul.f32 %v1170, %v1175
    %v1180 = vlaneseq
    %v1181 = vshrl.u32 %v1180, 7
    %v1182 = vsub.s32 0, %v1181
    %v1183 = vrot.slane %v1141, %v1182
    %v1185 = vadd.f32 %v1177, %v1183
    %v1186 = vadd.f32 %v1178, %v1183
    %v1187 = vpack.c.bf16 %v1186, %v1185
    %v1188 = vld [vmem:[#allocation2] sm:$0xf]
    %v1189 = vld [vmem:[#allocation2 + $0x4] sm:$0xf]
    %v1190 = vld [vmem:[#allocation2 + $0x8] sm:$0xf]
    %v1191 = vld [vmem:[#allocation2 + $0xc] sm:$0xf]
    %v1192 = vld [vmem:[%s8] sm:$0x1]
    %v1194 = vlaneseq
    %v1195 = vshrl.u32 %v1194, 7
    %v1196 = vsub.s32 0, %v1195
    %v1197 = vrot.slane %v1192, %v1196
    %v1203 = vunpack.c.l.b16 %v1188
    %v1204 = vunpack.c.l.b16 %v1189
    %v1205 = vunpack.c.l.b16 %v1190
    %v1206 = vunpack.c.l.b16 %v1191
    %v1207 = vpack.c.b16 %v1204, %v1203
    %v1208 = vpack.c.b16 %v1206, %v1205
    %v1212 = vsel %vm89, %v1187, 0
    %1214 = vmatprep.subr.bf16.mxu0 0
    %1215 = vmatpush1.bf16.msra.mxu0 %v1207
    %1216 = vmatprep.subr.bf16.mxu0 0
    %1217 = vmatpush1.bf16.msra.mxu0 %v1208
    %1218 = vmatprep.subr.bf16.mxu0 0
    %1219 = vmatpush1.bf16.msra.mxu0 0
    %1220 = vmatprep.subr.bf16.mxu0 0
    %1221 = vmatpush1.bf16.msra.mxu0 0
    %1222 = vmatprep.subr.bf16.mxu0 0
    %1223 = vmatpush1.bf16.msra.mxu0 0
    %1224 = vmatprep.subr.bf16.mxu0 0
    %1225 = vmatpush1.bf16.msra.mxu0 0
    %1226 = vmatprep.subr.bf16.mxu0 0
    %1227 = vmatpush1.bf16.msra.mxu0 0
    %1228 = vmatprep.subr.bf16.mxu0 0
    %1229 = vmatpush1.bf16.msra.mxu0 0
    %1230 = vmatprep.subr.bf16.mxu0 0
    %1231 = vmatpush1.bf16.msra.mxu0 0
    %1232 = vmatprep.subr.bf16.mxu0 0
    %1233 = vmatpush1.bf16.msra.mxu0 0
    %1234 = vmatprep.subr.bf16.mxu0 0
    %1235 = vmatpush1.bf16.msra.mxu0 0
    %1236 = vmatprep.subr.bf16.mxu0 0
    %1237 = vmatpush1.bf16.msra.mxu0 0
    %1238 = vmatprep.subr.bf16.mxu0 0
    %1239 = vmatpush1.bf16.msra.mxu0 0
    %1240 = vmatprep.subr.bf16.mxu0 0
    %1241 = vmatpush1.bf16.msra.mxu0 0
    %1242 = vmatprep.subr.bf16.mxu0 0
    %1243 = vmatpush1.bf16.msra.mxu0 0
    %1244 = vmatprep.subr.bf16.mxu0 0
    %1245 = vmatpush1.bf16.msra.mxu0 0
    %1246 = vmatprep.mubr.bf16.mxu0 0
    %1247 = vmatmul.mubr.bf16.gmra.mrb[0].mxu0 %v1212
    %v1248 = vpop.f32.mrb[0].mxu0
    %v1249 = vadd.f32 %v1197, %v1248
    %v1250 = vpop.f32.mrb[0].mxu0
    %v1251 = vpop.f32.mrb[0].mxu0
    %v1252 = vadd.f32 %v1197, %v1251
    %v1253 = vpop.f32.mrb[0].mxu0
    %1254 = vdwg.mxu0
    %v1255 = vmul.f32 %v1249, 0.5
    %v1256 = vmul.f32 %v1252, 0.5
    %v1257 = vmul.f32 %v1249, 0.044715
    %v1258 = vmul.f32 %v1252, 0.044715
    %v1259 = vmul.f32 %v1257, %v1249
    %v1260 = vmul.f32 %v1258, %v1252
    %v1261 = vmul.f32 %v1259, %v1249
    %v1262 = vmul.f32 %v1260, %v1252
    %v1263 = vadd.f32 %v1249, %v1261
    %v1264 = vadd.f32 %v1252, %v1262
    %v1265 = vmul.f32 %v1263, 0.7978846
    %v1266 = vmul.f32 %v1264, 0.7978846
    %v1267 = vtanh.pop %v1265
    %v1268 = vtanh.pop %v1266
    %v1269 = vadd.f32 %v1267, 1.0
    %v1270 = vadd.f32 %v1268, 1.0
    %v1271 = vmul.f32 %v1255, %v1269
    %v1272 = vmul.f32 %v1256, %v1270
    %v1273 = vpack.c.bf16 %v1272, %v1271
    %v1274 = vld [vmem:[%s9] sm:$0xf]
    %v1275 = vld [vmem:[%s9 + $0x4] sm:$0xf]
    %v1276 = vld [vmem:[%s9 + $0x8] sm:$0xf]
    %v1277 = vld [vmem:[%s9 + $0xc] sm:$0xf]
    %v1278 = vld [vmem:[%s9 + $0x10] sm:$0xf]
    %v1279 = vld [vmem:[%s9 + $0x14] sm:$0xf]
    %v1280 = vld [vmem:[%s9 + $0x18] sm:$0xf]
    %v1281 = vld [vmem:[%s9 + $0x1c] sm:$0xf]
    %v1282 = vld [vmem:[%s10] sm:$0x1]
    %v1284 = vlaneseq
    %v1285 = vshrl.u32 %v1284, 7
    %v1286 = vsub.s32 0, %v1285
    %v1287 = vrot.slane %v1282, %v1286
    %v1297 = vunpack.c.l.b16 %v1274
    %v1298 = vunpack.c.l.b16 %v1275
    %v1299 = vunpack.c.l.b16 %v1276
    %v1300 = vunpack.c.l.b16 %v1277
    %v1301 = vunpack.c.l.b16 %v1278
    %v1302 = vunpack.c.l.b16 %v1279
    %v1303 = vunpack.c.l.b16 %v1280
    %v1304 = vunpack.c.l.b16 %v1281
    %v1305 = vpack.c.b16 %v1298, %v1297
    %v1306 = vpack.c.b16 %v1300, %v1299
    %v1307 = vpack.c.b16 %v1302, %v1301
    %v1308 = vpack.c.b16 %v1304, %v1303
    %vm1313 = vcmask 523264
    %v1315 = vsel %vm1313, %v1273, 0
    %1317 = vmatprep.subr.bf16.mxu0 0
    %1318 = vmatpush1.bf16.msra.mxu0 %v1305
    %1319 = vmatprep.subr.bf16.mxu0 0
    %1320 = vmatpush1.bf16.msra.mxu0 %v1306
    %1321 = vmatprep.subr.bf16.mxu0 0
    %1322 = vmatpush1.bf16.msra.mxu0 %v1307
    %1323 = vmatprep.subr.bf16.mxu0 0
    %1324 = vmatpush1.bf16.msra.mxu0 %v1308
    %1325 = vmatprep.subr.bf16.mxu0 0
    %1326 = vmatpush1.bf16.msra.mxu0 0
    %1327 = vmatprep.subr.bf16.mxu0 0
    %1328 = vmatpush1.bf16.msra.mxu0 0
    %1329 = vmatprep.subr.bf16.mxu0 0
    %1330 = vmatpush1.bf16.msra.mxu0 0
    %1331 = vmatprep.subr.bf16.mxu0 0
    %1332 = vmatpush1.bf16.msra.mxu0 0
    %1333 = vmatprep.subr.bf16.mxu0 0
    %1334 = vmatpush1.bf16.msra.mxu0 0
    %1335 = vmatprep.subr.bf16.mxu0 0
    %1336 = vmatpush1.bf16.msra.mxu0 0
    %1337 = vmatprep.subr.bf16.mxu0 0
    %1338 = vmatpush1.bf16.msra.mxu0 0
    %1339 = vmatprep.subr.bf16.mxu0 0
    %1340 = vmatpush1.bf16.msra.mxu0 0
    %1341 = vmatprep.subr.bf16.mxu0 0
    %1342 = vmatpush1.bf16.msra.mxu0 0
    %1343 = vmatprep.subr.bf16.mxu0 0
    %1344 = vmatpush1.bf16.msra.mxu0 0
    %1345 = vmatprep.subr.bf16.mxu0 0
    %1346 = vmatpush1.bf16.msra.mxu0 0
    %1347 = vmatprep.subr.bf16.mxu0 0
    %1348 = vmatpush1.bf16.msra.mxu0 0
    %1349 = vmatprep.mubr.bf16.mxu0 0
    %1350 = vmatmul.mubr.bf16.gmra.mrb[0].mxu0 %v1315
    %v1351 = vpop.f32.mrb[0].mxu0
    %v1352 = vadd.f32 %v1287, %v1351
    %v1353 = vpop.f32.mrb[0].mxu0
    %v1354 = vpop.f32.mrb[0].mxu0
    %v1355 = vadd.f32 %v1287, %v1354
    %v1356 = vpop.f32.mrb[0].mxu0
    %1357 = vdwg.mxu0
    %v1358 = vadd.f32 %v1185, %v1352
    %v1359 = vadd.f32 %v1186, %v1355
    %v1360 = vld [vmem:[%s11] sm:$0x1]
    %v1361 = vld [vmem:[%s12] sm:$0x1]
    %v1362 = vsel %vm89, %v1358, 0.0
    %v1363 = vsel %vm89, %v1359, 0.0
    %v1364 = vadd.f32 %v1362, %v1363
    %v1365 = vrot.slane %v1364, 4
    %v1366 = vadd.f32 %v1364, %v1365
    %v1367 = vrot.slane %v1366, 2
    %v1368 = vadd.f32 %v1366, %v1367
    %v1369 = vrot.slane %v1368, 1
    %v1370 = vadd.f32 %v1368, %v1369
    %v1371 = vmul.f32 %v1370, %v1151
    %v1372 = vsub.f32 %v1358, %v1371
    %v1373 = vsub.f32 %v1359, %v1371
    %v1374 = vmul.f32 %v1372, %v1372
    %v1375 = vmul.f32 %v1373, %v1373
    %v1376 = vsel %vm89, %v1374, 0.0
    %v1377 = vsel %vm89, %v1375, 0.0
    %v1378 = vadd.f32 %v1376, %v1377
    %v1379 = vrot.slane %v1378, 4
    %v1380 = vadd.f32 %v1378, %v1379
    %v1381 = vrot.slane %v1380, 2
    %v1382 = vadd.f32 %v1380, %v1381
    %v1383 = vrot.slane %v1382, 1
    %v1384 = vadd.f32 %v1382, %v1383
    %v1385 = vmul.f32 %v1384, %v1151
    %v1386 = vadd.f32 %v1385, 1e-05
    %v1387 = vrsqrt.pop %v1386
    %v1388 = vmul.f32 %v1372, %v1387
    %v1389 = vmul.f32 %v1373, %v1387
    %v1391 = vlaneseq
    %v1392 = vshrl.u32 %v1391, 7
    %v1393 = vsub.s32 0, %v1392
    %v1394 = vrot.slane %v1360, %v1393
    %v1396 = vmul.f32 %v1388, %v1394
    %v1397 = vmul.f32 %v1389, %v1394
    %v1399 = vlaneseq
    %v1400 = vshrl.u32 %v1399, 7
    %v1401 = vsub.s32 0, %v1400
    %v1402 = vrot.slane %v1361, %v1401
    %v1404 = vadd.f32 %v1396, %v1402
    %v1405 = vadd.f32 %v1397, %v1402
    %1406 = vst.msk [vmem:[#allocation5] sm:$0xff] %vm89, %v1404
    %1407 = vst.msk [vmem:[#allocation5 + $0x8] sm:$0xff] %vm89, %v1405
    // Predicated region
    $region58: #{tpu_custom_call.1} parent=1 // pred_check
      _
    $region59: #{tpu_custom_call.1} parent=1 // pred_check_branch
      %1409 = sbr.rel (0) target = $region61
    $region60: #{tpu_custom_call.1} parent=1 // pred_region
      %s1411 = ssub.s32 256, 256
      %1412 = vsyncadd [#allocation4], %s1411
      %s1413 = sshll.u32 [#allocation5], 4
      %s1414 = int_to_ptr.vmem [resolvable:$true] %s1413
      %1419 = dma.vmem_to_hbm [thread:$0]  %s1414, 256, %s13, [#allocation4], 128, 128, 8
    $region61: #{tpu_custom_call.1} parent=1 // pred_fallthru
      _
    // Predicated region
    $region62: #{tpu_custom_call.1} parent=1 // pred_check
      _
    $region63: #{tpu_custom_call.1} parent=1 // pred_check_branch
      %1421 = sbr.rel (0) target = $region65
    $region64: #{tpu_custom_call.1} parent=1 // pred_region
      %s1423 = ssub.s32 1024, 1024
      %1424 = vsyncadd [#allocation7], %s1423
      %s1425 = sshll.u32 [#allocation6], 4
      %s1426 = int_to_ptr.vmem [resolvable:$true] %s1425
      %1431 = dma.vmem_to_hbm [thread:$0]  %s1426, 1024, %s14, [#allocation7], 128, 128, 8
    $region65: #{tpu_custom_call.1} parent=1 // pred_fallthru
      _
    // Predicated region
    $region66: #{tpu_custom_call.1} parent=1 // pred_check
      _
    $region67: #{tpu_custom_call.1} parent=1 // pred_check_branch
      %1433 = sbr.rel (0) target = $region69
    $region68: #{tpu_custom_call.1} parent=1 // pred_region
      %1434 = dma.done [#allocation4], 256
    $region69: #{tpu_custom_call.1} parent=1 // pred_fallthru
      _
    // Predicated region
    $region70: #{tpu_custom_call.1} parent=1 // pred_check
      _
    $region71: #{tpu_custom_call.1} parent=1 // pred_check_branch
      %1436 = sbr.rel (0) target = $region73
    $region72: #{tpu_custom_call.1} parent=1 // pred_region
      %1437 = dma.done [#allocation7], 1024
    $region73: #{tpu_custom_call.1} parent=1 // pred_fallthru
      _
    %1438 = vsyncpa [#allocation3], 1
    %1439 = vsyncpa [#allocation4], 1
    %1440 = vsyncpa [#allocation7], 1

</llo_original>
